<compile_context>
chip_gen: v7x
topology: tpu7x:2x2x1
jax: 0.10.0
libtpu: 0.0.40
codegen_flags: <defaults>
</compile_context>

<pallas_src>
import jax
import jax.numpy as jnp
from jax import lax
from jax.experimental import pallas as pl
from jax.experimental.pallas import tpu as pltpu


def _up_conv_kernel(x_main_ref, x_ext0_ref, x_ext1_ref, w_ref, scale_ref,
                    shift_ref, out_ref):
    """Fused 2x nearest upsample + 3x3 conv + BN(eval) + ReLU for one row tile.

    x_main_ref: (1, RT, W0+2, Cin)   zero-padded rows [i*RT, (i+1)*RT)
    x_ext0_ref: (1, 1,  W0+2, Cin)   zero-padded row  (i+1)*RT
    x_ext1_ref: (1, 1,  W0+2, Cin)   zero-padded row  (i+1)*RT + 1
    w_ref:      (2, 2, 4*Cin, Cout)  per-quadrant K-stacked conv taps
    scale_ref:  (1, Cout) f32        BN scale  = gamma * rsqrt(var + eps)
    shift_ref:  (1, Cout) f32        beta + (conv_bias - mean) * scale
    out_ref:    (1, RT, 2, W0, 2*Cout)   out[0, r, dr, c, dc*Cout + ch] = y[2r+dr, 2c+dc, ch]
    """
    rt = x_main_ref.shape[1]
    w0 = x_main_ref.shape[2] - 2
    cin = x_main_ref.shape[3]

    # Haloed original-resolution tile: original rows [i*RT - 1, (i+1)*RT] (zero-padded
    # at the image border by the host-side pad), zero-padded columns included.
    xh = jnp.concatenate(
        [x_main_ref[0], x_ext0_ref[0], x_ext1_ref[0]], axis=0)   # (RT+2, W0+2, Cin)

    scale = scale_ref[0]
    shift = shift_ref[0]

    # Output pixel (2r+dr, 2c+dc) of "conv3x3 on the nearest-upsampled image" only sees
    # original pixels rows {r+dr-1, r+dr} x cols {c+dc-1, c+dc}: the 3x3 taps collapse
    # to a 2x2 stencil per parity quadrant (weights pre-summed on the host).  Each
    # quadrant is a single MXU matmul with K = 4*Cin; no accumulator round-trips.
    for dr in range(2):
        ys = []
        for dc in range(2):
            lhs = jnp.concatenate(
                [xh[dr:dr + rt, dc:dc + w0],
                 xh[dr + 1:dr + 1 + rt, dc:dc + w0],
                 xh[dr:dr + rt, dc + 1:dc + 1 + w0],
                 xh[dr + 1:dr + 1 + rt, dc + 1:dc + 1 + w0]],
                axis=-1).reshape(rt * w0, 4 * cin)
            acc = jnp.dot(lhs, w_ref[dr, dc],
                          preferred_element_type=jnp.float32)    # (RT*W0, Cout) f32
            ys.append(jnp.maximum(acc * scale + shift, 0.0))     # f32 BN + ReLU epilogue
        # Lane-dense store: both column parities side by side in the last (2*Cout) dim.
        y = jnp.concatenate(ys, axis=-1).reshape(rt, w0, out_ref.shape[4])
        out_ref[0, :, dr] = y.astype(out_ref.dtype)


def _quadrant_weights(weight):
    """(Cout, Cin, 3, 3) conv weights -> (2, 2, 4*Cin, Cout) parity-quadrant taps.

    The contraction axis of quadrant (dr, dc) is ordered to match the kernel's LHS
    stacking: [ X[r+dr-1, c+dc-1], X[r+dr, c+dc-1], X[r+dr-1, c+dc], X[r+dr, c+dc] ].
    All pre-sums are done in f32 (before any bf16 cast).
    """
    w = jnp.transpose(weight.astype(jnp.float32), (2, 3, 1, 0))   # (dh, dw, Cin, Cout)
    quads = []
    for dr in range(2):
        if dr == 0:            # even output rows see original rows (r-1, r)
            rw = jnp.stack([w[0], w[1] + w[2]], axis=0)           # (a, dw, Cin, Cout)
        else:                  # odd output rows see original rows (r, r+1)
            rw = jnp.stack([w[0] + w[1], w[2]], axis=0)
        row = []
        for dc in range(2):
            if dc == 0:        # even output cols see original cols (c-1, c)
                cb = [rw[:, 0], rw[:, 1] + rw[:, 2]]              # cb[b]: (a, Cin, Cout)
            else:              # odd output cols see original cols (c, c+1)
                cb = [rw[:, 0] + rw[:, 1], rw[:, 2]]
            row.append(jnp.concatenate(
                [cb[0][0], cb[0][1], cb[1][0], cb[1][1]], axis=0))  # (4*Cin, Cout)
        quads.append(jnp.stack(row, axis=0))
    return jnp.stack(quads, axis=0)                               # (2, 2, 4*Cin, Cout)


def _pick_row_tile(N, H0, W0, Cin, Cout, cd_bytes, out_bytes,
                   budget_bytes=24 * 1024 * 1024):
    """Largest original-resolution row tile RT (dividing H0) whose estimated VMEM
    footprint (double-buffered blocks + weights + in-kernel temporaries) fits the
    budget.  24 MiB stays safely inside every generation (v7x: 64 MiB physical).
    When N == 1 the tile is additionally capped so the grid has >= 2 programs
    (v7x shards "parallel" grid axes across its two TensorCores)."""
    w0p = W0 + 2
    best = None
    for rt in range(1, H0 + 1):
        if H0 % rt:
            continue
        tile_in = (rt + 2) * w0p * Cin * cd_bytes
        in_b = 2 * tile_in                                  # double-buffered input windows
        w_b = 2 * 2 * 2 * 4 * Cin * Cout * cd_bytes         # double-buffered quadrant taps
        out_b = 2 * rt * 2 * W0 * 2 * Cout * out_bytes      # double-buffered output block
        tmp_b = (1 + 2 * 4) * tile_in + 4 * rt * W0 * Cout * 4   # xh + ~2 live LHS + f32 results
        if in_b + w_b + out_b + tmp_b <= budget_bytes:
            best = rt
    if best is None:
        best = 1
    if N * (H0 // best) < 2:
        for rt in range(best - 1, 0, -1):
            if H0 % rt == 0 and H0 // rt >= 2:
                best = rt
                break
    return best


def up_conv_forward(x_nchw, weight, bias, gamma, beta, running_mean, running_var,
                    eps=1e-5, *, row_tile=None, compute_dtype=jnp.bfloat16,
                    out_dtype=jnp.float32):
    """Fused Upsample(x2 nearest) + Conv3x3(pad=1, bias) + BatchNorm2d(eval) + ReLU.

    x_nchw: (N, Cin, H0, W0) -> (N, Cout, 2*H0, 2*W0) in `out_dtype`.
    `row_tile` counts ORIGINAL-resolution rows per grid step (output rows = 2*row_tile).
    """
    N, Cin, H0, W0 = x_nchw.shape
    Cout = weight.shape[0]
    H, W = 2 * H0, 2 * W0

    # BatchNorm (eval): per-channel scale/shift applied in the f32 epilogue (keeping the
    # scale out of the bf16 weights preserves mantissa for large gamma * rsqrt(var)).
    scale = (gamma / jnp.sqrt(running_var + eps)).astype(jnp.float32)
    shift = (beta + (bias - running_mean) * scale).astype(jnp.float32)
    scale = scale.reshape(1, Cout)
    shift = shift.reshape(1, Cout)

    w_quads = _quadrant_weights(weight).astype(compute_dtype)     # (2, 2, 4*Cin, Cout)

    # NCHW -> NHWC with a one-pixel zero border (rows AND cols) at the ORIGINAL
    # resolution; the 2x upsample itself is folded into the kernel, so no 4x-larger
    # array ever hits HBM and the kernel needs no halo clamping or gating.
    x_nhwc = jnp.transpose(x_nchw, (0, 2, 3, 1)).astype(compute_dtype)
    x_pad = jnp.pad(x_nhwc, ((0, 0), (1, 1), (1, 1), (0, 0)))     # (N, H0+2, W0+2, Cin)

    if row_tile is None:
        row_tile = _pick_row_tile(N, H0, W0, Cin, Cout,
                                  jnp.dtype(compute_dtype).itemsize,
                                  jnp.dtype(out_dtype).itemsize)
    assert 1 <= row_tile <= H0 and H0 % row_tile == 0, (row_tile, H0)
    RT = row_tile
    n_row_tiles = H0 // RT
    W0p = W0 + 2

    out5 = pl.pallas_call(
        _up_conv_kernel,
        out_shape=jax.ShapeDtypeStruct((N, H0, 2, W0, 2 * Cout), out_dtype),
        grid_spec=pltpu.PrefetchScalarGridSpec(
            num_scalar_prefetch=0,
            grid=(N, n_row_tiles),
            in_specs=[
                # RT padded rows starting at i*RT (tile's top halo + first RT-1 rows).
                pl.BlockSpec((1, RT, W0p, Cin), lambda n, i: (n, i, 0, 0)),
                # Two single-row bottom extensions (last original row + bottom halo);
                # the host zero-pad keeps both row indices in range for every tile.
                pl.BlockSpec((1, 1, W0p, Cin), lambda n, i: (n, (i + 1) * RT, 0, 0)),
                pl.BlockSpec((1, 1, W0p, Cin), lambda n, i: (n, (i + 1) * RT + 1, 0, 0)),
                pl.BlockSpec((2, 2, 4 * Cin, Cout), lambda n, i: (0, 0, 0, 0)),
                pl.BlockSpec((1, Cout), lambda n, i: (0, 0)),
                pl.BlockSpec((1, Cout), lambda n, i: (0, 0)),
            ],
            out_specs=pl.BlockSpec((1, RT, 2, W0, 2 * Cout),
                                   lambda n, i: (n, i, 0, 0, 0)),
        ),
        compiler_params=pltpu.CompilerParams(
            dimension_semantics=("parallel", "parallel"),
            vmem_limit_bytes=48 * 1024 * 1024,
        ),
    )(x_pad, x_pad, x_pad, w_quads, scale, shift)

    # (N, H0, 2, W0, 2*Cout) -> (N, 2*H0, 2*W0, Cout) is a pure (free) reshape; only the
    # NHWC -> NCHW transpose below costs an output-sized copy (drop it entirely if the
    # consumer runs NHWC).
    out_nhwc = out5.reshape(N, H, W, Cout)
    return jnp.transpose(out_nhwc, (0, 3, 1, 2))


def _reference(x_nchw, weight, bias, gamma, beta, running_mean, running_var, eps=1e-5):
    x_up = jnp.repeat(jnp.repeat(x_nchw, 2, axis=2), 2, axis=3)
    y = lax.conv_general_dilated(
        x_up, weight, window_strides=(1, 1), padding="SAME",
        dimension_numbers=("NCHW", "OIHW", "NCHW"),
        precision=lax.Precision.HIGHEST,
    )
    y = y + bias[None, :, None, None]
    y = (y - running_mean[None, :, None, None]) / jnp.sqrt(
        running_var[None, :, None, None] + eps
    ) * gamma[None, :, None, None] + beta[None, :, None, None]
    return jnp.maximum(y, 0.0)


if __name__ == "__main__":
    key = jax.random.PRNGKey(0)
    k_x, k_w, k_b, k_g, k_be, k_m, k_v = jax.random.split(key, 7)

    # Small, tiling-exercising decoder-like shapes: output spatial 32x32, grid (2, 2).
    N, Cin, Cout, H0, W0 = 2, 32, 64, 16, 16

    x = jax.random.normal(k_x, (N, Cin, H0, W0), dtype=jnp.float32)
    weight = jax.random.normal(k_w, (Cout, Cin, 3, 3), dtype=jnp.float32) * 0.1
    bias = jax.random.normal(k_b, (Cout,), dtype=jnp.float32) * 0.1
    gamma = 1.0 + 0.1 * jax.random.normal(k_g, (Cout,), dtype=jnp.float32)
    beta = 0.1 * jax.random.normal(k_be, (Cout,), dtype=jnp.float32)
    running_mean = 0.1 * jax.random.normal(k_m, (Cout,), dtype=jnp.float32)
    running_var = jnp.abs(jax.random.normal(k_v, (Cout,), dtype=jnp.float32)) + 0.5

    ref = _reference(x, weight, bias, gamma, beta, running_mean, running_var)

    # Correctness check: f32 MXU operands (same algorithm as the reference, only
    # re-associated by the parity pre-sums), 2x2 grid to exercise row-tile halos.
    out_f32 = up_conv_forward(x, weight, bias, gamma, beta, running_mean, running_var,
                              row_tile=8, compute_dtype=jnp.float32)
    out_f32 = jax.block_until_ready(out_f32)
    assert out_f32.shape == (N, Cout, 2 * H0, 2 * W0), out_f32.shape
    err = float(jnp.max(jnp.abs(out_f32 - ref)))
    assert jnp.allclose(out_f32, ref, rtol=1e-3, atol=1e-3), err

    # Performance path: bf16 MXU operands, f32 accumulation + f32 BN/ReLU epilogue.
    out_bf16 = up_conv_forward(x, weight, bias, gamma, beta, running_mean, running_var,
                               row_tile=8)
    out_bf16 = jax.block_until_ready(out_bf16)
    err = float(jnp.max(jnp.abs(out_bf16 - ref)))
    assert jnp.allclose(out_bf16, ref, rtol=5e-2, atol=5e-2), err

    # Auto row-tile selection + bf16 output (halved HBM writeback) path.
    out_auto = up_conv_forward(x, weight, bias, gamma, beta, running_mean, running_var,
                               out_dtype=jnp.bfloat16)
    out_auto = jax.block_until_ready(out_auto)
    out_auto = out_auto.astype(jnp.float32)
    err = float(jnp.max(jnp.abs(out_auto - ref)))
    assert jnp.allclose(out_auto, ref, rtol=1e-1, atol=1e-1), err

    print("KERNEL_OK")
</pallas_src>

<mosaic_0001>
module attributes {stable_mosaic.version = 11 : i64} {
  func.func @_up_conv_kernel(%arg0: i32, %arg1: i32, %arg2: memref<1x8x18x32xf32, #tpu.memory_space<vmem>>, %arg3: memref<1x1x18x32xf32, #tpu.memory_space<vmem>>, %arg4: memref<1x1x18x32xf32, #tpu.memory_space<vmem>>, %arg5: memref<2x2x128x64xf32, #tpu.memory_space<vmem>>, %arg6: memref<1x64xf32, #tpu.memory_space<vmem>>, %arg7: memref<1x64xf32, #tpu.memory_space<vmem>>, %arg8: memref<1x8x2x16x128xf32, #tpu.memory_space<vmem>>) attributes {dimension_semantics = [#tpu.dimension_semantics<parallel>, #tpu.dimension_semantics<parallel>], iteration_bounds = array<i64: 2, 2>, scalar_prefetch = 0 : i64, scratch_operands = 0 : i64, tpu.core_type = #tpu.core_type<tc>, window_params = [{transform_indices = @transform_0, window_bounds = array<i64: 1, 8, 18, 32>}, {transform_indices = @transform_1, window_bounds = array<i64: 1, 1, 18, 32>}, {transform_indices = @transform_2, window_bounds = array<i64: 1, 1, 18, 32>}, {pipeline_mode = #tpu.pipeline_mode<synchronous>, transform_indices = @transform_3, window_bounds = array<i64: 2, 2, 128, 64>}, {pipeline_mode = #tpu.pipeline_mode<synchronous>, transform_indices = @transform_4, window_bounds = array<i64: 1, 64>}, {pipeline_mode = #tpu.pipeline_mode<synchronous>, transform_indices = @transform_5, window_bounds = array<i64: 1, 64>}, {transform_indices = @transform_6, window_bounds = array<i64: 1, 8, 2, 16, 128>}]} {
    %c0 = arith.constant 0 : index
    %c0_0 = arith.constant 0 : index
    %c0_1 = arith.constant 0 : index
    %c0_2 = arith.constant 0 : index
    %0 = vector.load %arg2[%c0, %c0_0, %c0_1, %c0_2] : memref<1x8x18x32xf32, #tpu.memory_space<vmem>>, vector<1x8x18x32xf32>
    %1 = vector.shape_cast %0 : vector<1x8x18x32xf32> to vector<8x18x32xf32>
    %c0_3 = arith.constant 0 : index
    %c0_4 = arith.constant 0 : index
    %c0_5 = arith.constant 0 : index
    %c0_6 = arith.constant 0 : index
    %2 = vector.load %arg3[%c0_3, %c0_4, %c0_5, %c0_6] : memref<1x1x18x32xf32, #tpu.memory_space<vmem>>, vector<1x1x18x32xf32>
    %3 = vector.shape_cast %2 : vector<1x1x18x32xf32> to vector<1x18x32xf32>
    %c0_7 = arith.constant 0 : index
    %c0_8 = arith.constant 0 : index
    %c0_9 = arith.constant 0 : index
    %c0_10 = arith.constant 0 : index
    %4 = vector.load %arg4[%c0_7, %c0_8, %c0_9, %c0_10] : memref<1x1x18x32xf32, #tpu.memory_space<vmem>>, vector<1x1x18x32xf32>
    %5 = vector.shape_cast %4 : vector<1x1x18x32xf32> to vector<1x18x32xf32>
    %6 = tpu.concatenate %1, %3, %5 in 0 : vector<8x18x32xf32>, vector<1x18x32xf32>, vector<1x18x32xf32> -> vector<10x18x32xf32>
    %c0_11 = arith.constant 0 : index
    %c0_12 = arith.constant 0 : index
    %7 = vector.load %arg6[%c0_11, %c0_12] : memref<1x64xf32, #tpu.memory_space<vmem>>, vector<1x64xf32>
    %8 = vector.shape_cast %7 : vector<1x64xf32> to vector<64xf32>
    %c0_13 = arith.constant 0 : index
    %c0_14 = arith.constant 0 : index
    %9 = vector.load %arg7[%c0_13, %c0_14] : memref<1x64xf32, #tpu.memory_space<vmem>>, vector<1x64xf32>
    %10 = vector.shape_cast %9 : vector<1x64xf32> to vector<64xf32>
    %11 = vector.extract_strided_slice %6 {offsets = [0, 0, 0], sizes = [8, 16, 32], strides = [1, 1, 1]} : vector<10x18x32xf32> to vector<8x16x32xf32>
    %12 = vector.extract_strided_slice %6 {offsets = [1, 0, 0], sizes = [8, 16, 32], strides = [1, 1, 1]} : vector<10x18x32xf32> to vector<8x16x32xf32>
    %13 = vector.extract_strided_slice %6 {offsets = [0, 1, 0], sizes = [8, 16, 32], strides = [1, 1, 1]} : vector<10x18x32xf32> to vector<8x16x32xf32>
    %14 = vector.extract_strided_slice %6 {offsets = [1, 1, 0], sizes = [8, 16, 32], strides = [1, 1, 1]} : vector<10x18x32xf32> to vector<8x16x32xf32>
    %15 = tpu.concatenate %11, %12, %13, %14 in 2 : vector<8x16x32xf32>, vector<8x16x32xf32>, vector<8x16x32xf32>, vector<8x16x32xf32> -> vector<8x16x128xf32>
    %16 = vector.shape_cast %15 : vector<8x16x128xf32> to vector<128x128xf32>
    %c0_15 = arith.constant 0 : index
    %c0_16 = arith.constant 0 : index
    %c0_17 = arith.constant 0 : index
    %c0_18 = arith.constant 0 : index
    %17 = vector.load %arg5[%c0_15, %c0_16, %c0_17, %c0_18] : memref<2x2x128x64xf32, #tpu.memory_space<vmem>>, vector<1x1x128x64xf32>
    %18 = vector.shape_cast %17 : vector<1x1x128x64xf32> to vector<128x64xf32>
    %cst = arith.constant dense<0.000000e+00> : vector<128x64xf32>
    %19 = tpu.matmul %16, %18, %cst {dimension_numbers = #tpu.dot_dimension_numbers<[1], [0], [0], [1], [0, 0, 1, 1], [], []>} : vector<128x128xf32>, vector<128x64xf32>, vector<128x64xf32> -> vector<128x64xf32>
    %20 = vector.shape_cast %8 : vector<64xf32> to vector<1x64xf32>
    %21 = vector.broadcast %20 : vector<1x64xf32> to vector<128x64xf32>
    %22 = arith.mulf %19, %21 : vector<128x64xf32>
    %23 = vector.shape_cast %10 : vector<64xf32> to vector<1x64xf32>
    %24 = vector.broadcast %23 : vector<1x64xf32> to vector<128x64xf32>
    %25 = arith.addf %22, %24 : vector<128x64xf32>
    %cst_19 = arith.constant 0.000000e+00 : f32
    %26 = vector.broadcast %cst_19 : f32 to vector<128x64xf32>
    %27 = arith.maximumf %25, %26 : vector<128x64xf32>
    %28 = vector.extract_strided_slice %6 {offsets = [0, 1, 0], sizes = [8, 16, 32], strides = [1, 1, 1]} : vector<10x18x32xf32> to vector<8x16x32xf32>
    %29 = vector.extract_strided_slice %6 {offsets = [1, 1, 0], sizes = [8, 16, 32], strides = [1, 1, 1]} : vector<10x18x32xf32> to vector<8x16x32xf32>
    %30 = vector.extract_strided_slice %6 {offsets = [0, 2, 0], sizes = [8, 16, 32], strides = [1, 1, 1]} : vector<10x18x32xf32> to vector<8x16x32xf32>
    %31 = vector.extract_strided_slice %6 {offsets = [1, 2, 0], sizes = [8, 16, 32], strides = [1, 1, 1]} : vector<10x18x32xf32> to vector<8x16x32xf32>
    %32 = tpu.concatenate %28, %29, %30, %31 in 2 : vector<8x16x32xf32>, vector<8x16x32xf32>, vector<8x16x32xf32>, vector<8x16x32xf32> -> vector<8x16x128xf32>
    %33 = vector.shape_cast %32 : vector<8x16x128xf32> to vector<128x128xf32>
    %c0_20 = arith.constant 0 : index
    %c1 = arith.constant 1 : index
    %c0_21 = arith.constant 0 : index
    %c0_22 = arith.constant 0 : index
    %34 = vector.load %arg5[%c0_20, %c1, %c0_21, %c0_22] : memref<2x2x128x64xf32, #tpu.memory_space<vmem>>, vector<1x1x128x64xf32>
    %35 = vector.shape_cast %34 : vector<1x1x128x64xf32> to vector<128x64xf32>
    %cst_23 = arith.constant dense<0.000000e+00> : vector<128x64xf32>
    %36 = tpu.matmul %33, %35, %cst_23 {dimension_numbers = #tpu.dot_dimension_numbers<[1], [0], [0], [1], [0, 0, 1, 1], [], []>} : vector<128x128xf32>, vector<128x64xf32>, vector<128x64xf32> -> vector<128x64xf32>
    %37 = vector.shape_cast %8 : vector<64xf32> to vector<1x64xf32>
    %38 = vector.broadcast %37 : vector<1x64xf32> to vector<128x64xf32>
    %39 = arith.mulf %36, %38 : vector<128x64xf32>
    %40 = vector.shape_cast %10 : vector<64xf32> to vector<1x64xf32>
    %41 = vector.broadcast %40 : vector<1x64xf32> to vector<128x64xf32>
    %42 = arith.addf %39, %41 : vector<128x64xf32>
    %cst_24 = arith.constant 0.000000e+00 : f32
    %43 = vector.broadcast %cst_24 : f32 to vector<128x64xf32>
    %44 = arith.maximumf %42, %43 : vector<128x64xf32>
    %45 = tpu.concatenate %27, %44 in 1 : vector<128x64xf32>, vector<128x64xf32> -> vector<128x128xf32>
    %46 = vector.shape_cast %45 : vector<128x128xf32> to vector<8x16x128xf32>
    %c0_25 = arith.constant 0 : index
    %c0_26 = arith.constant 0 : index
    %c0_27 = arith.constant 0 : index
    %c0_28 = arith.constant 0 : index
    %c0_29 = arith.constant 0 : index
    %47 = vector.load %arg8[%c0_25, %c0_26, %c0_27, %c0_28, %c0_29] : memref<1x8x2x16x128xf32, #tpu.memory_space<vmem>>, vector<1x8x1x16x128xf32>
    %48 = vector.shape_cast %47 : vector<1x8x1x16x128xf32> to vector<8x16x128xf32>
    %49 = vector.shape_cast %46 : vector<8x16x128xf32> to vector<1x8x1x16x128xf32>
    tpu.vector_store %arg8[%c0_25, %c0_26, %c0_27, %c0_28, %c0_29], %49 {strides = array<i32>} : memref<1x8x2x16x128xf32, #tpu.memory_space<vmem>>, vector<1x8x1x16x128xf32>,
    %50 = vector.extract_strided_slice %6 {offsets = [1, 0, 0], sizes = [8, 16, 32], strides = [1, 1, 1]} : vector<10x18x32xf32> to vector<8x16x32xf32>
    %51 = vector.extract_strided_slice %6 {offsets = [2, 0, 0], sizes = [8, 16, 32], strides = [1, 1, 1]} : vector<10x18x32xf32> to vector<8x16x32xf32>
    %52 = vector.extract_strided_slice %6 {offsets = [1, 1, 0], sizes = [8, 16, 32], strides = [1, 1, 1]} : vector<10x18x32xf32> to vector<8x16x32xf32>
    %53 = vector.extract_strided_slice %6 {offsets = [2, 1, 0], sizes = [8, 16, 32], strides = [1, 1, 1]} : vector<10x18x32xf32> to vector<8x16x32xf32>
    %54 = tpu.concatenate %50, %51, %52, %53 in 2 : vector<8x16x32xf32>, vector<8x16x32xf32>, vector<8x16x32xf32>, vector<8x16x32xf32> -> vector<8x16x128xf32>
    %55 = vector.shape_cast %54 : vector<8x16x128xf32> to vector<128x128xf32>
    %c1_30 = arith.constant 1 : index
    %c0_31 = arith.constant 0 : index
    %c0_32 = arith.constant 0 : index
    %c0_33 = arith.constant 0 : index
    %56 = vector.load %arg5[%c1_30, %c0_31, %c0_32, %c0_33] : memref<2x2x128x64xf32, #tpu.memory_space<vmem>>, vector<1x1x128x64xf32>
    %57 = vector.shape_cast %56 : vector<1x1x128x64xf32> to vector<128x64xf32>
    %cst_34 = arith.constant dense<0.000000e+00> : vector<128x64xf32>
    %58 = tpu.matmul %55, %57, %cst_34 {dimension_numbers = #tpu.dot_dimension_numbers<[1], [0], [0], [1], [0, 0, 1, 1], [], []>} : vector<128x128xf32>, vector<128x64xf32>, vector<128x64xf32> -> vector<128x64xf32>
    %59 = vector.shape_cast %8 : vector<64xf32> to vector<1x64xf32>
    %60 = vector.broadcast %59 : vector<1x64xf32> to vector<128x64xf32>
    %61 = arith.mulf %58, %60 : vector<128x64xf32>
    %62 = vector.shape_cast %10 : vector<64xf32> to vector<1x64xf32>
    %63 = vector.broadcast %62 : vector<1x64xf32> to vector<128x64xf32>
    %64 = arith.addf %61, %63 : vector<128x64xf32>
    %cst_35 = arith.constant 0.000000e+00 : f32
    %65 = vector.broadcast %cst_35 : f32 to vector<128x64xf32>
    %66 = arith.maximumf %64, %65 : vector<128x64xf32>
    %67 = vector.extract_strided_slice %6 {offsets = [1, 1, 0], sizes = [8, 16, 32], strides = [1, 1, 1]} : vector<10x18x32xf32> to vector<8x16x32xf32>
    %68 = vector.extract_strided_slice %6 {offsets = [2, 1, 0], sizes = [8, 16, 32], strides = [1, 1, 1]} : vector<10x18x32xf32> to vector<8x16x32xf32>
    %69 = vector.extract_strided_slice %6 {offsets = [1, 2, 0], sizes = [8, 16, 32], strides = [1, 1, 1]} : vector<10x18x32xf32> to vector<8x16x32xf32>
    %70 = vector.extract_strided_slice %6 {offsets = [2, 2, 0], sizes = [8, 16, 32], strides = [1, 1, 1]} : vector<10x18x32xf32> to vector<8x16x32xf32>
    %71 = tpu.concatenate %67, %68, %69, %70 in 2 : vector<8x16x32xf32>, vector<8x16x32xf32>, vector<8x16x32xf32>, vector<8x16x32xf32> -> vector<8x16x128xf32>
    %72 = vector.shape_cast %71 : vector<8x16x128xf32> to vector<128x128xf32>
    %c1_36 = arith.constant 1 : index
    %c1_37 = arith.constant 1 : index
    %c0_38 = arith.constant 0 : index
    %c0_39 = arith.constant 0 : index
    %73 = vector.load %arg5[%c1_36, %c1_37, %c0_38, %c0_39] : memref<2x2x128x64xf32, #tpu.memory_space<vmem>>, vector<1x1x128x64xf32>
    %74 = vector.shape_cast %73 : vector<1x1x128x64xf32> to vector<128x64xf32>
    %cst_40 = arith.constant dense<0.000000e+00> : vector<128x64xf32>
    %75 = tpu.matmul %72, %74, %cst_40 {dimension_numbers = #tpu.dot_dimension_numbers<[1], [0], [0], [1], [0, 0, 1, 1], [], []>} : vector<128x128xf32>, vector<128x64xf32>, vector<128x64xf32> -> vector<128x64xf32>
    %76 = vector.shape_cast %8 : vector<64xf32> to vector<1x64xf32>
    %77 = vector.broadcast %76 : vector<1x64xf32> to vector<128x64xf32>
    %78 = arith.mulf %75, %77 : vector<128x64xf32>
    %79 = vector.shape_cast %10 : vector<64xf32> to vector<1x64xf32>
    %80 = vector.broadcast %79 : vector<1x64xf32> to vector<128x64xf32>
    %81 = arith.addf %78, %80 : vector<128x64xf32>
    %cst_41 = arith.constant 0.000000e+00 : f32
    %82 = vector.broadcast %cst_41 : f32 to vector<128x64xf32>
    %83 = arith.maximumf %81, %82 : vector<128x64xf32>
    %84 = tpu.concatenate %66, %83 in 1 : vector<128x64xf32>, vector<128x64xf32> -> vector<128x128xf32>
    %85 = vector.shape_cast %84 : vector<128x128xf32> to vector<8x16x128xf32>
    %c0_42 = arith.constant 0 : index
    %c0_43 = arith.constant 0 : index
    %c1_44 = arith.constant 1 : index
    %c0_45 = arith.constant 0 : index
    %c0_46 = arith.constant 0 : index
    %86 = vector.load %arg8[%c0_42, %c0_43, %c1_44, %c0_45, %c0_46] : memref<1x8x2x16x128xf32, #tpu.memory_space<vmem>>, vector<1x8x1x16x128xf32>
    %87 = vector.shape_cast %86 : vector<1x8x1x16x128xf32> to vector<8x16x128xf32>
    %88 = vector.shape_cast %85 : vector<8x16x128xf32> to vector<1x8x1x16x128xf32>
    tpu.vector_store %arg8[%c0_42, %c0_43, %c1_44, %c0_45, %c0_46], %88 {strides = array<i32>} : memref<1x8x2x16x128xf32, #tpu.memory_space<vmem>>, vector<1x8x1x16x128xf32>,
    return
  }
  func.func @transform_0(%arg0: i32, %arg1: i32) -> (i32, i32, i32, i32) {
    %c0_i32 = arith.constant 0 : i32
    %c0_i32_0 = arith.constant 0 : i32
    %c0_i32_1 = arith.constant 0 : i32
    return %arg0, %arg1, %c0_i32, %c0_i32_0 : i32, i32, i32, i32
  }
  func.func @transform_1(%arg0: i32, %arg1: i32) -> (i32, i32, i32, i32) {
    %c1_i32 = arith.constant 1 : i32
    %0 = arith.addi %arg1, %c1_i32 : i32
    %c8_i32 = arith.constant 8 : i32
    %1 = arith.muli %0, %c8_i32 : i32
    %c0_i32 = arith.constant 0 : i32
    %c0_i32_0 = arith.constant 0 : i32
    %c0_i32_1 = arith.constant 0 : i32
    return %arg0, %1, %c0_i32, %c0_i32_0 : i32, i32, i32, i32
  }
  func.func @transform_2(%arg0: i32, %arg1: i32) -> (i32, i32, i32, i32) {
    %c1_i32 = arith.constant 1 : i32
    %0 = arith.addi %arg1, %c1_i32 : i32
    %c8_i32 = arith.constant 8 : i32
    %1 = arith.muli %0, %c8_i32 : i32
    %c1_i32_0 = arith.constant 1 : i32
    %2 = arith.addi %1, %c1_i32_0 : i32
    %c0_i32 = arith.constant 0 : i32
    %c0_i32_1 = arith.constant 0 : i32
    %c0_i32_2 = arith.constant 0 : i32
    return %arg0, %2, %c0_i32, %c0_i32_1 : i32, i32, i32, i32
  }
  func.func @transform_3(%arg0: i32, %arg1: i32) -> (i32, i32, i32, i32) {
    %c0_i32 = arith.constant 0 : i32
    %c0_i32_0 = arith.constant 0 : i32
    %c0_i32_1 = arith.constant 0 : i32
    %c0_i32_2 = arith.constant 0 : i32
    %c0_i32_3 = arith.constant 0 : i32
    return %c0_i32, %c0_i32_0, %c0_i32_1, %c0_i32_2 : i32, i32, i32, i32
  }
  func.func @transform_4(%arg0: i32, %arg1: i32) -> (i32, i32) {
    %c0_i32 = arith.constant 0 : i32
    %c0_i32_0 = arith.constant 0 : i32
    %c0_i32_1 = arith.constant 0 : i32
    return %c0_i32, %c0_i32_0 : i32, i32
  }
  func.func @transform_5(%arg0: i32, %arg1: i32) -> (i32, i32) {
    %c0_i32 = arith.constant 0 : i32
    %c0_i32_0 = arith.constant 0 : i32
    %c0_i32_1 = arith.constant 0 : i32
    return %c0_i32, %c0_i32_0 : i32, i32
  }
  func.func @transform_6(%arg0: i32, %arg1: i32) -> (i32, i32, i32, i32, i32) {
    %c0_i32 = arith.constant 0 : i32
    %c0_i32_0 = arith.constant 0 : i32
    %c0_i32_1 = arith.constant 0 : i32
    %c0_i32_2 = arith.constant 0 : i32
    return %arg0, %arg1, %c0_i32, %c0_i32_0, %c0_i32_1 : i32, i32, i32, i32, i32
  }
}

</mosaic_0001>

<llo_original>
// kernel: tpu_custom_call.1
$region0: #{tpu_custom_call.1}
  #allocation0 [shape = 'u32[]', space=smem, size = 0x4, offset = 0x4, fixed_abs, tag = 'smem constant byte address 0x4 - core index']
  #allocation1 [shape = 'u32[144,128]{1,0:T(1,128)}', space=vmem, size = 0x12000, scoped, tag = 'internal scratch']
  %s0 = inlined_call_operand.vmem [shape: f32[2,18,18,32], index: 0, kind: input, shape index: {}]
  %s1 = inlined_call_operand.vmem [shape: f32[2,18,18,32], index: 1, kind: input, shape index: {}]
  %s2 = inlined_call_operand.vmem [shape: f32[2,18,18,32], index: 2, kind: input, shape index: {}]
  %s3 = inlined_call_operand.vmem [shape: f32[2,2,128,64], index: 3, kind: input, shape index: {}]
  %s4 = inlined_call_operand.vmem [shape: f32[1,64], index: 4, kind: input, shape index: {}]
  %s5 = inlined_call_operand.vmem [shape: f32[1,64], index: 5, kind: input, shape index: {}]
  %s6 = inlined_call_operand.hbm [shape: f32[2,16,2,16,128], index: 6, kind: output, shape index: {}]
  %s7 = sld [smem:[#allocation0]]
  $region57: #{tpu_custom_call.1} parent=0
    _
  %s9 = ssub.s32 1, %s7
  %s10 = scalar_select 0, %s9, %s7
  $region1: #{tpu_custom_call.1} parent=0
    #allocation2 [shape = 'u8[262144]{0}', space=vmem, size = 0x40000, scoped, tag = 'output window, operand 0']
    #allocation3 [shape = 's32[2]{0}', space=sflag, size = 0x8, scoped, tag = 'scoped memory for tpu_custom_call.1']
    %11 = vsyncpa [#allocation3], 0
    %s12 = scalar_lea.sflag [#allocation3], 1
    %13 = vsyncpa %s12, 0
    loop: start=0, step=1, limit=6
    $region2: #{tpu_custom_call.1} parent=1 // loop_pre_header
      _
    $region3: #{tpu_custom_call.1} parent=1 // loop_header
      %s15 = sphi 0, %s19
      %p16 = scmp.ge.s32.totalorder %s15, 6
      %s22 = sphi 0, %s34
      %s23 = sphi 0, %s30
      %s24 = sphi 0, %s22
      %s25 = sphi 0, %s23
      %s26 = sphi 0, %s24
      %s27 = sphi 0, %s25
      %s39 = sphi 0, %s41
      %s42 = sphi 0, %s39
      %s43 = sphi 0, %s42
      %s59 = sphi 0, %s43
      %s71 = sphi 0, %s73
      %s74 = sphi 0, %s71
      %s75 = sphi 0, %s74
      %s91 = sphi 0, %s75
      %s105 = sphi 0, %s107
      %s108 = sphi 0, %s105
      %s109 = sphi 0, %s108
      %s125 = sphi 0, %s109
      %s129 = sphi 0, %s129
      %s131 = sphi 0, %s129
      %s132 = sphi 0, %s131
      %s146 = sphi 0, %s132
      %s150 = sphi 0, %s150
      %s152 = sphi 0, %s150
      %s153 = sphi 0, %s152
      %s167 = sphi 0, %s153
      %s171 = sphi 0, %s171
      %s173 = sphi 0, %s171
      %s174 = sphi 0, %s173
      %s188 = sphi 0, %s174
      %s196 = sphi 0, %s198
      %s199 = sphi 0, %s196
      %s200 = sphi 0, %s199
      %s216 = sphi 0, %s200
    $region4: #{tpu_custom_call.1} parent=1 // loop_header_branch
      %18 = sbr.rel (%p16) target = $region8
    $region5: #{tpu_custom_call.1} parent=1 // loop_body
      %s20 = ssub.s32 %s15, 1
      %s21 = ssub.s32 %s15, 2
      %s28 = sadd.s32 1, %s23
      %p29 = scmp.ge.s32.totalorder %s28, 2
      %s30 = scalar_select %p29, 0, %s28
      %s31 = sadd.s32 1, %s22
      %s32 = scalar_select %p29, %s31, %s22
      %p33 = scmp.ge.s32.totalorder %s32, 2
      %s34 = scalar_select %p33, 0, %s32
      %s35 = ssub.s32 %s22, %s34
      %s36 = ssub.s32 %s23, %s30
      %s37 = sor.u32 %s35, %s36
      %p38 = scmp.eq.s32.totalorder %s37, 0
      %s40 = sadd.s32 %s39, 1
      %s41 = scalar_select %p38, %s39, %s40
      %p44 = pneg %p38
      %p45 = scmp.eq.s32.totalorder %s15, 3
      %p46 = por %p44, %p45
      %p47 = scmp.ne.s32.totalorder %s39, %s42
      %p48 = scmp.eq.s32.totalorder %s15, 0
      %p49 = por %p47, %p48
      %p50 = scmp.ne.s32.totalorder %s39, %s42
      %p51 = scmp.eq.s32.totalorder %s20, 3
      %p52 = por %p50, %p51
      %p53 = scmp.ne.s32.totalorder %s42, %s43
      %p54 = scmp.eq.s32.totalorder %s20, 0
      %p55 = por %p53, %p54
      %p56 = scmp.ne.s32.totalorder %s42, %s43
      %p57 = scmp.eq.s32.totalorder %s21, 3
      %p58 = por %p56, %p57
      %p60 = scmp.ne.s32.totalorder %s43, %s59
      %p61 = scmp.eq.s32.totalorder %s21, 0
      %p62 = por %p60, %p61
      %s63 = sadd.s32 %s23, 1
      %s64 = smul.u32 %s63, 8
      %s65 = sadd.s32 %s30, 1
      %s66 = smul.u32 %s65, 8
      %s67 = ssub.s32 %s22, %s34
      %s68 = ssub.s32 %s64, %s66
      %s69 = sor.u32 %s67, %s68
      %p70 = scmp.eq.s32.totalorder %s69, 0
      %s72 = sadd.s32 %s71, 1
      %s73 = scalar_select %p70, %s71, %s72
      %p76 = pneg %p70
      %p77 = scmp.eq.s32.totalorder %s15, 3
      %p78 = por %p76, %p77
      %p79 = scmp.ne.s32.totalorder %s71, %s74
      %p80 = scmp.eq.s32.totalorder %s15, 0
      %p81 = por %p79, %p80
      %p82 = scmp.ne.s32.totalorder %s71, %s74
      %p83 = scmp.eq.s32.totalorder %s20, 3
      %p84 = por %p82, %p83
      %p85 = scmp.ne.s32.totalorder %s74, %s75
      %p86 = scmp.eq.s32.totalorder %s20, 0
      %p87 = por %p85, %p86
      %p88 = scmp.ne.s32.totalorder %s74, %s75
      %p89 = scmp.eq.s32.totalorder %s21, 3
      %p90 = por %p88, %p89
      %p92 = scmp.ne.s32.totalorder %s75, %s91
      %p93 = scmp.eq.s32.totalorder %s21, 0
      %p94 = por %p92, %p93
      %s95 = sadd.s32 %s23, 1
      %s96 = smul.u32 %s95, 8
      %s97 = sadd.s32 %s96, 1
      %s98 = sadd.s32 %s30, 1
      %s99 = smul.u32 %s98, 8
      %s100 = sadd.s32 %s99, 1
      %s101 = ssub.s32 %s22, %s34
      %s102 = ssub.s32 %s97, %s100
      %s103 = sor.u32 %s101, %s102
      %p104 = scmp.eq.s32.totalorder %s103, 0
      %s106 = sadd.s32 %s105, 1
      %s107 = scalar_select %p104, %s105, %s106
      %p110 = pneg %p104
      %p111 = scmp.eq.s32.totalorder %s15, 3
      %p112 = por %p110, %p111
      %p113 = scmp.ne.s32.totalorder %s105, %s108
      %p114 = scmp.eq.s32.totalorder %s15, 0
      %p115 = por %p113, %p114
      %p116 = scmp.ne.s32.totalorder %s105, %s108
      %p117 = scmp.eq.s32.totalorder %s20, 3
      %p118 = por %p116, %p117
      %p119 = scmp.ne.s32.totalorder %s108, %s109
      %p120 = scmp.eq.s32.totalorder %s20, 0
      %p121 = por %p119, %p120
      %p122 = scmp.ne.s32.totalorder %s108, %s109
      %p123 = scmp.eq.s32.totalorder %s21, 3
      %p124 = por %p122, %p123
      %p126 = scmp.ne.s32.totalorder %s109, %s125
      %p127 = scmp.eq.s32.totalorder %s21, 0
      %p128 = por %p126, %p127
      %s130 = sadd.s32 %s129, 1
      %p133 = scmp.eq.s32.totalorder %s15, 3
      %p134 = scmp.ne.s32.totalorder %s129, %s131
      %p135 = scmp.eq.s32.totalorder %s15, 0
      %p136 = por %p134, %p135
      %p137 = scmp.ne.s32.totalorder %s129, %s131
      %p138 = scmp.eq.s32.totalorder %s20, 3
      %p139 = por %p137, %p138
      %p140 = scmp.ne.s32.totalorder %s131, %s132
      %p141 = scmp.eq.s32.totalorder %s20, 0
      %p142 = por %p140, %p141
      %p143 = scmp.ne.s32.totalorder %s131, %s132
      %p144 = scmp.eq.s32.totalorder %s21, 3
      %p145 = por %p143, %p144
      %p147 = scmp.ne.s32.totalorder %s132, %s146
      %p148 = scmp.eq.s32.totalorder %s21, 0
      %p149 = por %p147, %p148
      %s151 = sadd.s32 %s150, 1
      %p154 = scmp.eq.s32.totalorder %s15, 3
      %p155 = scmp.ne.s32.totalorder %s150, %s152
      %p156 = scmp.eq.s32.totalorder %s15, 0
      %p157 = por %p155, %p156
      %p158 = scmp.ne.s32.totalorder %s150, %s152
      %p159 = scmp.eq.s32.totalorder %s20, 3
      %p160 = por %p158, %p159
      %p161 = scmp.ne.s32.totalorder %s152, %s153
      %p162 = scmp.eq.s32.totalorder %s20, 0
      %p163 = por %p161, %p162
      %p164 = scmp.ne.s32.totalorder %s152, %s153
      %p165 = scmp.eq.s32.totalorder %s21, 3
      %p166 = por %p164, %p165
      %p168 = scmp.ne.s32.totalorder %s153, %s167
      %p169 = scmp.eq.s32.totalorder %s21, 0
      %p170 = por %p168, %p169
      %s172 = sadd.s32 %s171, 1
      %p175 = scmp.eq.s32.totalorder %s15, 3
      %p176 = scmp.ne.s32.totalorder %s171, %s173
      %p177 = scmp.eq.s32.totalorder %s15, 0
      %p178 = por %p176, %p177
      %p179 = scmp.ne.s32.totalorder %s171, %s173
      %p180 = scmp.eq.s32.totalorder %s20, 3
      %p181 = por %p179, %p180
      %p182 = scmp.ne.s32.totalorder %s173, %s174
      %p183 = scmp.eq.s32.totalorder %s20, 0
      %p184 = por %p182, %p183
      %p185 = scmp.ne.s32.totalorder %s173, %s174
      %p186 = scmp.eq.s32.totalorder %s21, 3
      %p187 = por %p185, %p186
      %p189 = scmp.ne.s32.totalorder %s174, %s188
      %p190 = scmp.eq.s32.totalorder %s21, 0
      %p191 = por %p189, %p190
      %s192 = ssub.s32 %s22, %s34
      %s193 = ssub.s32 %s23, %s30
      %s194 = sor.u32 %s192, %s193
      %p195 = scmp.eq.s32.totalorder %s194, 0
      %s197 = sadd.s32 %s196, 1
      %s198 = scalar_select %p195, %s196, %s197
      %p201 = pneg %p195
      %p202 = scmp.eq.s32.totalorder %s15, 3
      %p203 = por %p201, %p202
      %p204 = scmp.ne.s32.totalorder %s196, %s199
      %p205 = scmp.eq.s32.totalorder %s15, 0
      %p206 = por %p204, %p205
      %p207 = scmp.ne.s32.totalorder %s196, %s199
      %p208 = scmp.eq.s32.totalorder %s20, 3
      %p209 = por %p207, %p208
      %p210 = scmp.ne.s32.totalorder %s199, %s200
      %p211 = scmp.eq.s32.totalorder %s20, 0
      %p212 = por %p210, %p211
      %p213 = scmp.ne.s32.totalorder %s199, %s200
      %p214 = scmp.eq.s32.totalorder %s21, 3
      %p215 = por %p213, %p214
      %p217 = scmp.ne.s32.totalorder %s200, %s216
      %p218 = scmp.eq.s32.totalorder %s21, 0
      %p219 = por %p217, %p218
      %p220 = scmp.le.s32.totalorder 1, %s15
      %p221 = scmp.lt.s32.totalorder %s15, 5
      %p222 = pnand %p220, %p221
      %p223 = pneg %p222
      // Predicated region
      $region9: #{tpu_custom_call.1} parent=5 // pred_check
        _
      $region10: #{tpu_custom_call.1} parent=5 // pred_check_branch
        %225 = sbr.rel (%p222) target = $region12
      $region11: #{tpu_custom_call.1} parent=5 // pred_region
        %s226 = ssub.s32 %s15, 1
        // Predicated region
        $region13: #{tpu_custom_call.1} parent=11 // pred_check
          %p227 = pneg %p142
        $region14: #{tpu_custom_call.1} parent=11 // pred_check_branch
          %229 = sbr.rel (%p227) target = $region16
        $region15: #{tpu_custom_call.1} parent=11 // pred_region
          _
        $region16: #{tpu_custom_call.1} parent=11 // pred_fallthru
          _
        // Predicated region
        $region17: #{tpu_custom_call.1} parent=11 // pred_check
          %p230 = pneg %p163
        $region18: #{tpu_custom_call.1} parent=11 // pred_check_branch
          %232 = sbr.rel (%p230) target = $region20
        $region19: #{tpu_custom_call.1} parent=11 // pred_region
          _
        $region20: #{tpu_custom_call.1} parent=11 // pred_fallthru
          _
        // Predicated region
        $region21: #{tpu_custom_call.1} parent=11 // pred_check
          %p233 = pneg %p184
        $region22: #{tpu_custom_call.1} parent=11 // pred_check_branch
          %235 = sbr.rel (%p233) target = $region24
        $region23: #{tpu_custom_call.1} parent=11 // pred_region
          _
        $region24: #{tpu_custom_call.1} parent=11 // pred_fallthru
          _
      $region12: #{tpu_custom_call.1} parent=5 // pred_fallthru
        _
      %p236 = scmp.lt.s32.totalorder %s15, 4
      // Predicated region
      $region25: #{tpu_custom_call.1} parent=5 // pred_check
        %p237 = pneg %p236
      $region26: #{tpu_custom_call.1} parent=5 // pred_check_branch
        %239 = sbr.rel (%p237) target = $region28
      $region27: #{tpu_custom_call.1} parent=5 // pred_region
        // Predicated region
        $region29: #{tpu_custom_call.1} parent=27 // pred_check
          %p240 = pneg %p49
        $region30: #{tpu_custom_call.1} parent=27 // pred_check_branch
          %242 = sbr.rel (%p240) target = $region32
        $region31: #{tpu_custom_call.1} parent=27 // pred_region
          %s243 = smul.u32 8, %s23
          %s244 = ssub.s32 18, %s243
          %p245 = scmp.lt.s32.totalorder %s244, 8
          %s246 = scalar_select %p245, %s244, 8
          %s247 = smul.u32 128, %s246
          %s248 = smul.u32 %s247, 3
          %p249 = scmp.lt.s32.totalorder %s22, 1
          %s250 = scalar_select %p249, %s22, 1
          %p251 = scmp.lt.s32.totalorder %s243, 17
          %s252 = scalar_select %p251, %s243, 17
          %s253 = smul.addr %s252, 3
          %s254 = smul.addr %s250, 54
          %s255 = sadd.s32 %s253, %s254
          %s256 = smul.addr %s255, 8
          %s257 = scalar_lea.vmem %s0, %s256
          %s258 = smul.u32 8, %s23
          %s259 = ssub.s32 18, %s258
          %p260 = scmp.lt.s32.totalorder %s259, 8
          %s261 = scalar_select %p260, %s259, 8
          %s262 = smul.u32 128, %s261
          %s263 = smul.u32 %s262, 3
        $region32: #{tpu_custom_call.1} parent=27 // pred_fallthru
          _
        // Predicated region
        $region33: #{tpu_custom_call.1} parent=27 // pred_check
          %p264 = pneg %p81
        $region34: #{tpu_custom_call.1} parent=27 // pred_check_branch
          %266 = sbr.rel (%p264) target = $region36
        $region35: #{tpu_custom_call.1} parent=27 // pred_region
          %s267 = sadd.s32 %s23, 1
          %s268 = smul.u32 %s267, 8
          %p269 = scmp.lt.s32.totalorder %s22, 1
          %s270 = scalar_select %p269, %s22, 1
          %p271 = scmp.lt.s32.totalorder %s268, 17
          %s272 = scalar_select %p271, %s268, 17
          %s273 = smul.addr %s272, 3
          %s274 = smul.addr %s270, 54
          %s275 = sadd.s32 %s273, %s274
          %s276 = smul.addr %s275, 8
          %s277 = scalar_lea.vmem %s1, %s276
          %s278 = sadd.s32 %s23, 1
          %s279 = smul.u32 %s278, 8
        $region36: #{tpu_custom_call.1} parent=27 // pred_fallthru
          _
        // Predicated region
        $region37: #{tpu_custom_call.1} parent=27 // pred_check
          %p280 = pneg %p115
        $region38: #{tpu_custom_call.1} parent=27 // pred_check_branch
          %282 = sbr.rel (%p280) target = $region40
        $region39: #{tpu_custom_call.1} parent=27 // pred_region
          %s283 = sadd.s32 %s23, 1
          %s284 = smul.u32 %s283, 8
          %s285 = sadd.s32 %s284, 1
          %p286 = scmp.lt.s32.totalorder %s22, 1
          %s287 = scalar_select %p286, %s22, 1
          %p288 = scmp.lt.s32.totalorder %s285, 17
          %s289 = scalar_select %p288, %s285, 17
          %s290 = smul.addr %s289, 3
          %s291 = smul.addr %s287, 54
          %s292 = sadd.s32 %s290, %s291
          %s293 = smul.addr %s292, 8
          %s294 = scalar_lea.vmem %s2, %s293
          %s295 = sadd.s32 %s23, 1
          %s296 = smul.u32 %s295, 8
          %s297 = sadd.s32 %s296, 1
        $region40: #{tpu_custom_call.1} parent=27 // pred_fallthru
          _
      $region28: #{tpu_custom_call.1} parent=5 // pred_fallthru
        _
      %p298 = scmp.le.s32.totalorder 1, %s15
      %p299 = scmp.lt.s32.totalorder %s15, 5
      %p300 = pnand %p298, %p299
      %p301 = pneg %p300
      // Predicated region
      $region41: #{tpu_custom_call.1} parent=5 // pred_check
        _
      $region42: #{tpu_custom_call.1} parent=5 // pred_check_branch
        %303 = sbr.rel (%p300) target = $region44
      $region43: #{tpu_custom_call.1} parent=5 // pred_region
        %s304 = ssub.s32 %s15, 1
        %s305 = smul.u32 8, %s25
        %s306 = ssub.s32 18, %s305
        %p307 = scmp.lt.s32.totalorder %s306, 8
        %s308 = scalar_select %p307, %s306, 8
        %s309 = smul.u32 128, %s308
        %s310 = smul.u32 %s309, 3
        %p311 = scmp.lt.s32.totalorder %s24, 1
        %s312 = scalar_select %p311, %s24, 1
        %p313 = scmp.lt.s32.totalorder %s305, 17
        %s314 = scalar_select %p313, %s305, 17
        %s315 = smul.addr %s314, 3
        %s316 = smul.addr %s312, 54
        %s317 = sadd.s32 %s315, %s316
        %s318 = smul.addr %s317, 8
        %s319 = scalar_lea.vmem %s0, %s318
        %p320 = pneg %p55
        %p321 = pneg %p52
        %s322 = sadd.s32 %s25, 1
        %s323 = smul.u32 %s322, 8
        %p324 = scmp.lt.s32.totalorder %s24, 1
        %s325 = scalar_select %p324, %s24, 1
        %p326 = scmp.lt.s32.totalorder %s323, 17
        %s327 = scalar_select %p326, %s323, 17
        %s328 = smul.addr %s327, 3
        %s329 = smul.addr %s325, 54
        %s330 = sadd.s32 %s328, %s329
        %s331 = smul.addr %s330, 8
        %s332 = scalar_lea.vmem %s1, %s331
        %p333 = pneg %p87
        %p334 = pneg %p84
        %s335 = sadd.s32 %s25, 1
        %s336 = smul.u32 %s335, 8
        %s337 = sadd.s32 %s336, 1
        %p338 = scmp.lt.s32.totalorder %s24, 1
        %s339 = scalar_select %p338, %s24, 1
        %p340 = scmp.lt.s32.totalorder %s337, 17
        %s341 = scalar_select %p340, %s337, 17
        %s342 = smul.addr %s341, 3
        %s343 = smul.addr %s339, 54
        %s344 = sadd.s32 %s342, %s343
        %s345 = smul.addr %s344, 8
        %s346 = scalar_lea.vmem %s2, %s345
        %p347 = pneg %p121
        %p348 = pneg %p118
        %p349 = pneg %p142
        %p350 = pneg %p139
        %p351 = pneg %p163
        %p352 = pneg %p160
        %p353 = pneg %p184
        %p354 = pneg %p181
        %p355 = pneg %p212
        %p356 = pneg %p209
        %s357 = sand.u32 %s199, 1
        %s358 = scalar_lea.sflag [#allocation3], %s357
        %s359 = sand.u32 %s199, 1
        %s360 = smul.addr %s359, 256
        %s361 = scalar_lea.vmem [#allocation2], %s360
        %s362 = smul.u32 8, %s25
        %s363 = ssub.s32 18, %s362
        %p364 = scmp.lt.s32.totalorder %s363, 8
        %s365 = scalar_select %p364, %s363, 8
        %s366 = smul.u32 128, %s365
        %s367 = smul.u32 %s366, 3
        %p368 = scmp.lt.s32.totalorder %s24, 1
        %s369 = scalar_select %p368, %s24, 1
        %p370 = scmp.lt.s32.totalorder %s362, 17
        %s371 = scalar_select %p370, %s362, 17
        %s372 = smul.addr %s371, 3
        %s373 = smul.addr %s369, 54
        %s374 = sadd.s32 %s372, %s373
        %s375 = smul.addr %s374, 8
        %s376 = scalar_lea.vmem %s0, %s375
        %s377 = smul.u32 8, %s25
        %s378 = ssub.s32 18, %s377
        %p379 = scmp.lt.s32.totalorder %s378, 8
        %s380 = scalar_select %p379, %s378, 8
        %s381 = smul.u32 128, %s380
        %s382 = smul.u32 %s381, 3
        %s383 = sadd.s32 %s25, 1
        %s384 = smul.u32 %s383, 8
        %p385 = scmp.lt.s32.totalorder %s24, 1
        %s386 = scalar_select %p385, %s24, 1
        %p387 = scmp.lt.s32.totalorder %s384, 17
        %s388 = scalar_select %p387, %s384, 17
        %s389 = smul.addr %s388, 3
        %s390 = smul.addr %s386, 54
        %s391 = sadd.s32 %s389, %s390
        %s392 = smul.addr %s391, 8
        %s393 = scalar_lea.vmem %s1, %s392
        %s394 = sadd.s32 %s25, 1
        %s395 = smul.u32 %s394, 8
        %s396 = sadd.s32 %s25, 1
        %s397 = smul.u32 %s396, 8
        %s398 = sadd.s32 %s397, 1
        %p399 = scmp.lt.s32.totalorder %s24, 1
        %s400 = scalar_select %p399, %s24, 1
        %p401 = scmp.lt.s32.totalorder %s398, 17
        %s402 = scalar_select %p401, %s398, 17
        %s403 = smul.addr %s402, 3
        %s404 = smul.addr %s400, 54
        %s405 = sadd.s32 %s403, %s404
        %s406 = smul.addr %s405, 8
        %s407 = scalar_lea.vmem %s2, %s406
        %s408 = sadd.s32 %s25, 1
        %s409 = smul.u32 %s408, 8
        %s410 = sadd.s32 %s409, 1
        %s411 = smul.u32 8, %s25
        %v412 = vld [vmem:[%s376] sm:$0xff]
        %v413 = vld [vmem:[%s376 + $0x8] sm:$0xff]
        %v414 = vld [vmem:[%s376 + $0x10] sm:$0x3]
        %v415 = vld [vmem:[%s376 + $0x18] sm:$0xff]
        %v416 = vld [vmem:[%s376 + $0x20] sm:$0xff]
        %v417 = vld [vmem:[%s376 + $0x28] sm:$0x3]
        %v418 = vld [vmem:[%s376 + $0x30] sm:$0xff]
        %v419 = vld [vmem:[%s376 + $0x38] sm:$0xff]
        %v420 = vld [vmem:[%s376 + $0x40] sm:$0x3]
        %v421 = vld [vmem:[%s376 + $0x48] sm:$0xff]
        %v422 = vld [vmem:[%s376 + $0x50] sm:$0xff]
        %v423 = vld [vmem:[%s376 + $0x58] sm:$0x3]
        %v424 = vld [vmem:[%s376 + $0x60] sm:$0xff]
        %v425 = vld [vmem:[%s376 + $0x68] sm:$0xff]
        %v426 = vld [vmem:[%s376 + $0x70] sm:$0x3]
        %v427 = vld [vmem:[%s376 + $0x78] sm:$0xff]
        %v428 = vld [vmem:[%s376 + $0x80] sm:$0xff]
        %v429 = vld [vmem:[%s376 + $0x88] sm:$0x3]
        %v430 = vld [vmem:[%s376 + $0x90] sm:$0xff]
        %v431 = vld [vmem:[%s376 + $0x98] sm:$0xff]
        %v432 = vld [vmem:[%s376 + $0xa0] sm:$0x3]
        %v433 = vld [vmem:[%s376 + $0xa8] sm:$0xff]
        %v434 = vld [vmem:[%s376 + $0xb0] sm:$0xff]
        %v435 = vld [vmem:[%s376 + $0xb8] sm:$0x3]
        %v436 = vld [vmem:[%s393] sm:$0xff]
        %v437 = vld [vmem:[%s393 + $0x8] sm:$0xff]
        %v438 = vld [vmem:[%s393 + $0x10] sm:$0x3]
        %v439 = vld [vmem:[%s407] sm:$0xff]
        %v440 = vld [vmem:[%s407 + $0x8] sm:$0xff]
        %v441 = vld [vmem:[%s407 + $0x10] sm:$0x3]
        %v442 = vld [vmem:[%s4] sm:$0x1]
        %v443 = vld [vmem:[%s5] sm:$0x1]
        %460 = vrot.lane.b32.xlu0 %v415, 32
        %v461 = vpop.permute.xlu0 %460
        %462 = vrot.lane.b32.xlu0 %v416, 32
        %v463 = vpop.permute.xlu0 %462
        %464 = vrot.lane.b32.xlu0 %v418, 32
        %v465 = vpop.permute.xlu0 %464
        %466 = vrot.lane.b32.xlu0 %v419, 32
        %v467 = vpop.permute.xlu0 %466
        %468 = vrot.lane.b32.xlu0 %v421, 32
        %v469 = vpop.permute.xlu0 %468
        %470 = vrot.lane.b32.xlu0 %v422, 32
        %v471 = vpop.permute.xlu0 %470
        %472 = vrot.lane.b32.xlu0 %v424, 32
        %v473 = vpop.permute.xlu0 %472
        %474 = vrot.lane.b32.xlu0 %v425, 32
        %v475 = vpop.permute.xlu0 %474
        %476 = vrot.lane.b32.xlu0 %v427, 32
        %v477 = vpop.permute.xlu0 %476
        %478 = vrot.lane.b32.xlu0 %v428, 32
        %v479 = vpop.permute.xlu0 %478
        %480 = vrot.lane.b32.xlu0 %v430, 32
        %v481 = vpop.permute.xlu0 %480
        %482 = vrot.lane.b32.xlu0 %v431, 32
        %v483 = vpop.permute.xlu0 %482
        %484 = vrot.lane.b32.xlu0 %v433, 32
        %v485 = vpop.permute.xlu0 %484
        %486 = vrot.lane.b32.xlu0 %v434, 32
        %v487 = vpop.permute.xlu0 %486
        %488 = vrot.lane.b32.xlu0 %v436, 32
        %v489 = vpop.permute.xlu0 %488
        %490 = vrot.lane.b32.xlu0 %v437, 32
        %v491 = vpop.permute.xlu0 %490
        %vm518 = vcmask 1046528
        %v519 = vrot.slane %v412, 1
        %v520 = vrot.slane %v413, 1
        %v521 = vsel %vm518, %v519, %v520
        %v522 = vrot.slane %v414, 1
        %v523 = vsel %vm518, %v520, %v522
        %v524 = vrot.slane %v415, 1
        %v525 = vrot.slane %v416, 1
        %v526 = vsel %vm518, %v524, %v525
        %v527 = vrot.slane %v417, 1
        %v528 = vsel %vm518, %v525, %v527
        %v529 = vrot.slane %v418, 1
        %v530 = vrot.slane %v419, 1
        %v531 = vsel %vm518, %v529, %v530
        %v532 = vrot.slane %v420, 1
        %v533 = vsel %vm518, %v530, %v532
        %v534 = vrot.slane %v421, 1
        %v535 = vrot.slane %v422, 1
        %v536 = vsel %vm518, %v534, %v535
        %v537 = vrot.slane %v423, 1
        %v538 = vsel %vm518, %v535, %v537
        %v539 = vrot.slane %v424, 1
        %v540 = vrot.slane %v425, 1
        %v541 = vsel %vm518, %v539, %v540
        %v542 = vrot.slane %v426, 1
        %v543 = vsel %vm518, %v540, %v542
        %v544 = vrot.slane %v427, 1
        %v545 = vrot.slane %v428, 1
        %v546 = vsel %vm518, %v544, %v545
        %v547 = vrot.slane %v429, 1
        %v548 = vsel %vm518, %v545, %v547
        %v549 = vrot.slane %v430, 1
        %v550 = vrot.slane %v431, 1
        %v551 = vsel %vm518, %v549, %v550
        %v552 = vrot.slane %v432, 1
        %v553 = vsel %vm518, %v550, %v552
        %v554 = vrot.slane %v433, 1
        %v555 = vrot.slane %v434, 1
        %v556 = vsel %vm518, %v554, %v555
        %v557 = vrot.slane %v435, 1
        %v558 = vsel %vm518, %v555, %v557
        %559 = vrot.lane.b32.xlu0 %v521, 64
        %v560 = vpop.permute.xlu0 %559
        %561 = vrot.lane.b32.xlu0 %v523, 64
        %v562 = vpop.permute.xlu0 %561
        %563 = vrot.lane.b32.xlu0 %v526, 64
        %v564 = vpop.permute.xlu0 %563
        %565 = vrot.lane.b32.xlu0 %v528, 64
        %v566 = vpop.permute.xlu0 %565
        %567 = vrot.lane.b32.xlu0 %v531, 64
        %v568 = vpop.permute.xlu0 %567
        %569 = vrot.lane.b32.xlu0 %v533, 64
        %v570 = vpop.permute.xlu0 %569
        %571 = vrot.lane.b32.xlu0 %v536, 64
        %v572 = vpop.permute.xlu0 %571
        %573 = vrot.lane.b32.xlu0 %v538, 64
        %v574 = vpop.permute.xlu0 %573
        %575 = vrot.lane.b32.xlu0 %v541, 64
        %v576 = vpop.permute.xlu0 %575
        %577 = vrot.lane.b32.xlu0 %v543, 64
        %v578 = vpop.permute.xlu0 %577
        %579 = vrot.lane.b32.xlu0 %v546, 64
        %v580 = vpop.permute.xlu0 %579
        %581 = vrot.lane.b32.xlu0 %v548, 64
        %v582 = vpop.permute.xlu0 %581
        %583 = vrot.lane.b32.xlu0 %v551, 64
        %v584 = vpop.permute.xlu0 %583
        %585 = vrot.lane.b32.xlu0 %v553, 64
        %v586 = vpop.permute.xlu0 %585
        %587 = vrot.lane.b32.xlu0 %v556, 64
        %v588 = vpop.permute.xlu0 %587
        %589 = vrot.lane.b32.xlu0 %v558, 64
        %v590 = vpop.permute.xlu0 %589
        %v608 = vrot.slane %v436, 1
        %v609 = vrot.slane %v437, 1
        %v610 = vsel %vm518, %v608, %v609
        %v611 = vrot.slane %v438, 1
        %v612 = vsel %vm518, %v609, %v611
        %613 = vrot.lane.b32.xlu0 %v526, 96
        %v614 = vpop.permute.xlu0 %613
        %615 = vrot.lane.b32.xlu0 %v528, 96
        %v616 = vpop.permute.xlu0 %615
        %617 = vrot.lane.b32.xlu0 %v531, 96
        %v618 = vpop.permute.xlu0 %617
        %619 = vrot.lane.b32.xlu0 %v533, 96
        %v620 = vpop.permute.xlu0 %619
        %621 = vrot.lane.b32.xlu0 %v536, 96
        %v622 = vpop.permute.xlu0 %621
        %623 = vrot.lane.b32.xlu0 %v538, 96
        %v624 = vpop.permute.xlu0 %623
        %625 = vrot.lane.b32.xlu0 %v541, 96
        %v626 = vpop.permute.xlu0 %625
        %627 = vrot.lane.b32.xlu0 %v543, 96
        %v628 = vpop.permute.xlu0 %627
        %629 = vrot.lane.b32.xlu0 %v546, 96
        %v630 = vpop.permute.xlu0 %629
        %631 = vrot.lane.b32.xlu0 %v548, 96
        %v632 = vpop.permute.xlu0 %631
        %633 = vrot.lane.b32.xlu0 %v551, 96
        %v634 = vpop.permute.xlu0 %633
        %635 = vrot.lane.b32.xlu0 %v553, 96
        %v636 = vpop.permute.xlu0 %635
        %637 = vrot.lane.b32.xlu0 %v556, 96
        %v638 = vpop.permute.xlu0 %637
        %639 = vrot.lane.b32.xlu0 %v558, 96
        %v640 = vpop.permute.xlu0 %639
        %641 = vrot.lane.b32.xlu0 %v610, 96
        %v642 = vpop.permute.xlu0 %641
        %643 = vrot.lane.b32.xlu0 %v612, 96
        %v644 = vpop.permute.xlu0 %643
        %vm661 = vcmask 261120
        %v662 = vsel %vm661, %v412, %v461
        %v663 = vsel %vm661, %v413, %v463
        %v664 = vsel %vm661, %v415, %v465
        %v665 = vsel %vm661, %v416, %v467
        %v666 = vsel %vm661, %v418, %v469
        %v667 = vsel %vm661, %v419, %v471
        %v668 = vsel %vm661, %v421, %v473
        %v669 = vsel %vm661, %v422, %v475
        %v670 = vsel %vm661, %v424, %v477
        %v671 = vsel %vm661, %v425, %v479
        %v672 = vsel %vm661, %v427, %v481
        %v673 = vsel %vm661, %v428, %v483
        %v674 = vsel %vm661, %v430, %v485
        %v675 = vsel %vm661, %v431, %v487
        %v676 = vsel %vm661, %v433, %v489
        %v677 = vsel %vm661, %v434, %v491
        %vm678 = vcmask 523264
        %v679 = vsel %vm678, %v662, %v560
        %v680 = vsel %vm678, %v663, %v562
        %v681 = vsel %vm678, %v664, %v564
        %v682 = vsel %vm678, %v665, %v566
        %v683 = vsel %vm678, %v666, %v568
        %v684 = vsel %vm678, %v667, %v570
        %v685 = vsel %vm678, %v668, %v572
        %v686 = vsel %vm678, %v669, %v574
        %v687 = vsel %vm678, %v670, %v576
        %v688 = vsel %vm678, %v671, %v578
        %v689 = vsel %vm678, %v672, %v580
        %v690 = vsel %vm678, %v673, %v582
        %v691 = vsel %vm678, %v674, %v584
        %v692 = vsel %vm678, %v675, %v586
        %v693 = vsel %vm678, %v676, %v588
        %v694 = vsel %vm678, %v677, %v590
        %vm695 = vcmask 785408
        %v696 = vsel %vm695, %v679, %v614
        %v697 = vsel %vm695, %v680, %v616
        %v698 = vsel %vm695, %v681, %v618
        %v699 = vsel %vm695, %v682, %v620
        %v700 = vsel %vm695, %v683, %v622
        %v701 = vsel %vm695, %v684, %v624
        %v702 = vsel %vm695, %v685, %v626
        %v703 = vsel %vm695, %v686, %v628
        %v704 = vsel %vm695, %v687, %v630
        %v705 = vsel %vm695, %v688, %v632
        %v706 = vsel %vm695, %v689, %v634
        %v707 = vsel %vm695, %v690, %v636
        %v708 = vsel %vm695, %v691, %v638
        %v709 = vsel %vm695, %v692, %v640
        %v710 = vsel %vm695, %v693, %v642
        %v711 = vsel %vm695, %v694, %v644
        %v712 = vld [vmem:[%s3] sm:$0xff]
        %v713 = vld [vmem:[%s3 + $0x8] sm:$0xff]
        %v714 = vld [vmem:[%s3 + $0x10] sm:$0xff]
        %v715 = vld [vmem:[%s3 + $0x18] sm:$0xff]
        %v716 = vld [vmem:[%s3 + $0x20] sm:$0xff]
        %v717 = vld [vmem:[%s3 + $0x28] sm:$0xff]
        %v718 = vld [vmem:[%s3 + $0x30] sm:$0xff]
        %v719 = vld [vmem:[%s3 + $0x38] sm:$0xff]
        %v720 = vld [vmem:[%s3 + $0x40] sm:$0xff]
        %v721 = vld [vmem:[%s3 + $0x48] sm:$0xff]
        %v722 = vld [vmem:[%s3 + $0x50] sm:$0xff]
        %v723 = vld [vmem:[%s3 + $0x58] sm:$0xff]
        %v724 = vld [vmem:[%s3 + $0x60] sm:$0xff]
        %v725 = vld [vmem:[%s3 + $0x68] sm:$0xff]
        %v726 = vld [vmem:[%s3 + $0x70] sm:$0xff]
        %v727 = vld [vmem:[%s3 + $0x78] sm:$0xff]
        %728 = vmatprep.subr.mxu0 0.0
        %729 = vmatpush1.msra.mxu0 %v712
        %730 = vmatprep.subr.mxu0 0.0
        %731 = vmatpush1.msra.mxu0 %v713
        %732 = vmatprep.subr.mxu0 0.0
        %733 = vmatpush1.msra.mxu0 %v714
        %734 = vmatprep.subr.mxu0 0.0
        %735 = vmatpush1.msra.mxu0 %v715
        %736 = vmatprep.subr.mxu0 0.0
        %737 = vmatpush1.msra.mxu0 %v716
        %738 = vmatprep.subr.mxu0 0.0
        %739 = vmatpush1.msra.mxu0 %v717
        %740 = vmatprep.subr.mxu0 0.0
        %741 = vmatpush1.msra.mxu0 %v718
        %742 = vmatprep.subr.mxu0 0.0
        %743 = vmatpush1.msra.mxu0 %v719
        %744 = vmatprep.subr.mxu0 0.0
        %745 = vmatpush1.msra.mxu0 %v720
        %746 = vmatprep.subr.mxu0 0.0
        %747 = vmatpush1.msra.mxu0 %v721
        %748 = vmatprep.subr.mxu0 0.0
        %749 = vmatpush1.msra.mxu0 %v722
        %750 = vmatprep.subr.mxu0 0.0
        %751 = vmatpush1.msra.mxu0 %v723
        %752 = vmatprep.subr.mxu0 0.0
        %753 = vmatpush1.msra.mxu0 %v724
        %754 = vmatprep.subr.mxu0 0.0
        %755 = vmatpush1.msra.mxu0 %v725
        %756 = vmatprep.subr.mxu0 0.0
        %757 = vmatpush1.msra.mxu0 %v726
        %758 = vmatprep.subr.mxu0 0.0
        %759 = vmatpush1.msra.mxu0 %v727
        %760 = vmatprep.subr.mxu0 0.0
        %761 = vmatpush1.msra.mxu0 0.0
        %762 = vmatprep.subr.mxu0 0.0
        %763 = vmatpush1.msra.mxu0 0.0
        %764 = vmatprep.subr.mxu0 0.0
        %765 = vmatpush1.msra.mxu0 0.0
        %766 = vmatprep.subr.mxu0 0.0
        %767 = vmatpush1.msra.mxu0 0.0
        %768 = vmatprep.subr.mxu0 0.0
        %769 = vmatpush1.msra.mxu0 0.0
        %770 = vmatprep.subr.mxu0 0.0
        %771 = vmatpush1.msra.mxu0 0.0
        %772 = vmatprep.subr.mxu0 0.0
        %773 = vmatpush1.msra.mxu0 0.0
        %774 = vmatprep.subr.mxu0 0.0
        %775 = vmatpush1.msra.mxu0 0.0
        %776 = vmatprep.subr.mxu0 0.0
        %777 = vmatpush1.msra.mxu0 0.0
        %778 = vmatprep.subr.mxu0 0.0
        %779 = vmatpush1.msra.mxu0 0.0
        %780 = vmatprep.subr.mxu0 0.0
        %781 = vmatpush1.msra.mxu0 0.0
        %782 = vmatprep.subr.mxu0 0.0
        %783 = vmatpush1.msra.mxu0 0.0
        %784 = vmatprep.subr.mxu0 0.0
        %785 = vmatpush1.msra.mxu0 0.0
        %786 = vmatprep.subr.mxu0 0.0
        %787 = vmatpush1.msra.mxu0 0.0
        %788 = vmatprep.subr.mxu0 0.0
        %789 = vmatpush1.msra.mxu0 0.0
        %790 = vmatprep.subr.mxu0 0.0
        %791 = vmatpush1.msra.mxu0 0.0
        %792 = vmatprep.mubr.f32.mxu0 0.0
        %793 = vmatmul.mubr.f32.gmra.mrb[0].mxu0 %v696
        %v794 = vpop.f32.mrb[0].mxu0
        %v795 = vadd.f32 0.0, %v794
        %v796 = vpop.f32.mrb[0].mxu0
        %797 = vmatprep.mubr.f32.mxu0 0.0
        %798 = vmatmul.mubr.f32.gmra.mrb[0].mxu0 %v697
        %v799 = vpop.f32.mrb[0].mxu0
        %v800 = vadd.f32 0.0, %v799
        %v801 = vpop.f32.mrb[0].mxu0
        %802 = vmatprep.mubr.f32.mxu0 0.0
        %803 = vmatmul.mubr.f32.gmra.mrb[0].mxu0 %v698
        %v804 = vpop.f32.mrb[0].mxu0
        %v805 = vadd.f32 0.0, %v804
        %v806 = vpop.f32.mrb[0].mxu0
        %807 = vmatprep.mubr.f32.mxu0 0.0
        %808 = vmatmul.mubr.f32.gmra.mrb[0].mxu0 %v699
        %v809 = vpop.f32.mrb[0].mxu0
        %v810 = vadd.f32 0.0, %v809
        %v811 = vpop.f32.mrb[0].mxu0
        %812 = vmatprep.mubr.f32.mxu0 0.0
        %813 = vmatmul.mubr.f32.gmra.mrb[0].mxu0 %v700
        %v814 = vpop.f32.mrb[0].mxu0
        %v815 = vadd.f32 0.0, %v814
        %v816 = vpop.f32.mrb[0].mxu0
        %817 = vmatprep.mubr.f32.mxu0 0.0
        %818 = vmatmul.mubr.f32.gmra.mrb[0].mxu0 %v701
        %v819 = vpop.f32.mrb[0].mxu0
        %v820 = vadd.f32 0.0, %v819
        %v821 = vpop.f32.mrb[0].mxu0
        %822 = vmatprep.mubr.f32.mxu0 0.0
        %823 = vmatmul.mubr.f32.gmra.mrb[0].mxu0 %v702
        %v824 = vpop.f32.mrb[0].mxu0
        %v825 = vadd.f32 0.0, %v824
        %v826 = vpop.f32.mrb[0].mxu0
        %827 = vmatprep.mubr.f32.mxu0 0.0
        %828 = vmatmul.mubr.f32.gmra.mrb[0].mxu0 %v703
        %v829 = vpop.f32.mrb[0].mxu0
        %v830 = vadd.f32 0.0, %v829
        %v831 = vpop.f32.mrb[0].mxu0
        %832 = vmatprep.mubr.f32.mxu0 0.0
        %833 = vmatmul.mubr.f32.gmra.mrb[0].mxu0 %v704
        %v834 = vpop.f32.mrb[0].mxu0
        %v835 = vadd.f32 0.0, %v834
        %v836 = vpop.f32.mrb[0].mxu0
        %837 = vmatprep.mubr.f32.mxu0 0.0
        %838 = vmatmul.mubr.f32.gmra.mrb[0].mxu0 %v705
        %v839 = vpop.f32.mrb[0].mxu0
        %v840 = vadd.f32 0.0, %v839
        %v841 = vpop.f32.mrb[0].mxu0
        %842 = vmatprep.mubr.f32.mxu0 0.0
        %843 = vmatmul.mubr.f32.gmra.mrb[0].mxu0 %v706
        %v844 = vpop.f32.mrb[0].mxu0
        %v845 = vadd.f32 0.0, %v844
        %v846 = vpop.f32.mrb[0].mxu0
        %847 = vmatprep.mubr.f32.mxu0 0.0
        %848 = vmatmul.mubr.f32.gmra.mrb[0].mxu0 %v707
        %v849 = vpop.f32.mrb[0].mxu0
        %v850 = vadd.f32 0.0, %v849
        %v851 = vpop.f32.mrb[0].mxu0
        %852 = vmatprep.mubr.f32.mxu0 0.0
        %853 = vmatmul.mubr.f32.gmra.mrb[0].mxu0 %v708
        %v854 = vpop.f32.mrb[0].mxu0
        %v855 = vadd.f32 0.0, %v854
        %v856 = vpop.f32.mrb[0].mxu0
        %857 = vmatprep.mubr.f32.mxu0 0.0
        %858 = vmatmul.mubr.f32.gmra.mrb[0].mxu0 %v709
        %v859 = vpop.f32.mrb[0].mxu0
        %v860 = vadd.f32 0.0, %v859
        %v861 = vpop.f32.mrb[0].mxu0
        %862 = vmatprep.mubr.f32.mxu0 0.0
        %863 = vmatmul.mubr.f32.gmra.mrb[0].mxu0 %v710
        %v864 = vpop.f32.mrb[0].mxu0
        %v865 = vadd.f32 0.0, %v864
        %v866 = vpop.f32.mrb[0].mxu0
        %867 = vmatprep.mubr.f32.mxu0 0.0
        %868 = vmatmul.mubr.f32.gmra.mrb[0].mxu0 %v711
        %v869 = vpop.f32.mrb[0].mxu0
        %v870 = vadd.f32 0.0, %v869
        %v871 = vpop.f32.mrb[0].mxu0
        %872 = vdwg.mxu0
        %v874 = vlaneseq
        %v875 = vshrl.u32 %v874, 7
        %v876 = vsub.s32 0, %v875
        %v877 = vrot.slane %v442, %v876
        %v879 = vmul.f32 %v795, %v877
        %v880 = vmul.f32 %v800, %v877
        %v881 = vmul.f32 %v805, %v877
        %v882 = vmul.f32 %v810, %v877
        %v883 = vmul.f32 %v815, %v877
        %v884 = vmul.f32 %v820, %v877
        %v885 = vmul.f32 %v825, %v877
        %v886 = vmul.f32 %v830, %v877
        %v887 = vmul.f32 %v835, %v877
        %v888 = vmul.f32 %v840, %v877
        %v889 = vmul.f32 %v845, %v877
        %v890 = vmul.f32 %v850, %v877
        %v891 = vmul.f32 %v855, %v877
        %v892 = vmul.f32 %v860, %v877
        %v893 = vmul.f32 %v865, %v877
        %v894 = vmul.f32 %v870, %v877
        %v896 = vlaneseq
        %v897 = vshrl.u32 %v896, 7
        %v898 = vsub.s32 0, %v897
        %v899 = vrot.slane %v443, %v898
        %v901 = vadd.f32 %v879, %v899
        %v902 = vadd.f32 %v880, %v899
        %v903 = vadd.f32 %v881, %v899
        %v904 = vadd.f32 %v882, %v899
        %v905 = vadd.f32 %v883, %v899
        %v906 = vadd.f32 %v884, %v899
        %v907 = vadd.f32 %v885, %v899
        %v908 = vadd.f32 %v886, %v899
        %v909 = vadd.f32 %v887, %v899
        %v910 = vadd.f32 %v888, %v899
        %v911 = vadd.f32 %v889, %v899
        %v912 = vadd.f32 %v890, %v899
        %v913 = vadd.f32 %v891, %v899
        %v914 = vadd.f32 %v892, %v899
        %v915 = vadd.f32 %v893, %v899
        %v916 = vadd.f32 %v894, %v899
        %v917 = vmax.f32 %v901, 0.0
        %v918 = vmax.f32 %v902, 0.0
        %v919 = vmax.f32 %v903, 0.0
        %v920 = vmax.f32 %v904, 0.0
        %v921 = vmax.f32 %v905, 0.0
        %v922 = vmax.f32 %v906, 0.0
        %v923 = vmax.f32 %v907, 0.0
        %v924 = vmax.f32 %v908, 0.0
        %v925 = vmax.f32 %v909, 0.0
        %v926 = vmax.f32 %v910, 0.0
        %v927 = vmax.f32 %v911, 0.0
        %v928 = vmax.f32 %v912, 0.0
        %v929 = vmax.f32 %v913, 0.0
        %v930 = vmax.f32 %v914, 0.0
        %v931 = vmax.f32 %v915, 0.0
        %v932 = vmax.f32 %v916, 0.0
        %933 = vrot.lane.b32.xlu0 %v417, 32
        %v934 = vpop.permute.xlu0 %933
        %935 = vrot.lane.b32.xlu0 %v420, 32
        %v936 = vpop.permute.xlu0 %935
        %937 = vrot.lane.b32.xlu0 %v423, 32
        %v938 = vpop.permute.xlu0 %937
        %939 = vrot.lane.b32.xlu0 %v426, 32
        %v940 = vpop.permute.xlu0 %939
        %941 = vrot.lane.b32.xlu0 %v429, 32
        %v942 = vpop.permute.xlu0 %941
        %943 = vrot.lane.b32.xlu0 %v432, 32
        %v944 = vpop.permute.xlu0 %943
        %945 = vrot.lane.b32.xlu0 %v435, 32
        %v946 = vpop.permute.xlu0 %945
        %947 = vrot.lane.b32.xlu0 %v438, 32
        %v948 = vpop.permute.xlu0 %947
        %957 = vrot.lane.b32.xlu0 %v522, 64
        %v958 = vpop.permute.xlu0 %957
        %959 = vrot.lane.b32.xlu0 %v527, 64
        %v960 = vpop.permute.xlu0 %959
        %961 = vrot.lane.b32.xlu0 %v532, 64
        %v962 = vpop.permute.xlu0 %961
        %963 = vrot.lane.b32.xlu0 %v537, 64
        %v964 = vpop.permute.xlu0 %963
        %965 = vrot.lane.b32.xlu0 %v542, 64
        %v966 = vpop.permute.xlu0 %965
        %967 = vrot.lane.b32.xlu0 %v547, 64
        %v968 = vpop.permute.xlu0 %967
        %969 = vrot.lane.b32.xlu0 %v552, 64
        %v970 = vpop.permute.xlu0 %969
        %971 = vrot.lane.b32.xlu0 %v557, 64
        %v972 = vpop.permute.xlu0 %971
        %981 = vrot.lane.b32.xlu0 %v527, 96
        %v982 = vpop.permute.xlu0 %981
        %983 = vrot.lane.b32.xlu0 %v532, 96
        %v984 = vpop.permute.xlu0 %983
        %985 = vrot.lane.b32.xlu0 %v537, 96
        %v986 = vpop.permute.xlu0 %985
        %987 = vrot.lane.b32.xlu0 %v542, 96
        %v988 = vpop.permute.xlu0 %987
        %989 = vrot.lane.b32.xlu0 %v547, 96
        %v990 = vpop.permute.xlu0 %989
        %991 = vrot.lane.b32.xlu0 %v552, 96
        %v992 = vpop.permute.xlu0 %991
        %993 = vrot.lane.b32.xlu0 %v557, 96
        %v994 = vpop.permute.xlu0 %993
        %995 = vrot.lane.b32.xlu0 %v611, 96
        %v996 = vpop.permute.xlu0 %995
        %v1005 = vsel %vm661, %v414, %v934
        %v1006 = vsel %vm661, %v417, %v936
        %v1007 = vsel %vm661, %v420, %v938
        %v1008 = vsel %vm661, %v423, %v940
        %v1009 = vsel %vm661, %v426, %v942
        %v1010 = vsel %vm661, %v429, %v944
        %v1011 = vsel %vm661, %v432, %v946
        %v1012 = vsel %vm661, %v435, %v948
        %v1013 = vsel %vm678, %v1005, %v958
        %v1014 = vsel %vm678, %v1006, %v960
        %v1015 = vsel %vm678, %v1007, %v962
        %v1016 = vsel %vm678, %v1008, %v964
        %v1017 = vsel %vm678, %v1009, %v966
        %v1018 = vsel %vm678, %v1010, %v968
        %v1019 = vsel %vm678, %v1011, %v970
        %v1020 = vsel %vm678, %v1012, %v972
        %v1021 = vsel %vm695, %v1013, %v982
        %v1022 = vsel %vm695, %v1014, %v984
        %v1023 = vsel %vm695, %v1015, %v986
        %v1024 = vsel %vm695, %v1016, %v988
        %v1025 = vsel %vm695, %v1017, %v990
        %v1026 = vsel %vm695, %v1018, %v992
        %v1027 = vsel %vm695, %v1019, %v994
        %v1028 = vsel %vm695, %v1020, %v996
        %v1053 = vrot.slane %v696, 1
        %v1054 = vrot.slane %v697, 1
        %v1055 = vsel %vm518, %v1053, %v1054
        %v1056 = vrot.slane %v1021, 1
        %v1057 = vsel %vm518, %v1054, %v1056
        %v1058 = vrot.slane %v698, 1
        %v1059 = vrot.slane %v699, 1
        %v1060 = vsel %vm518, %v1058, %v1059
        %v1061 = vrot.slane %v1022, 1
        %v1062 = vsel %vm518, %v1059, %v1061
        %v1063 = vrot.slane %v700, 1
        %v1064 = vrot.slane %v701, 1
        %v1065 = vsel %vm518, %v1063, %v1064
        %v1066 = vrot.slane %v1023, 1
        %v1067 = vsel %vm518, %v1064, %v1066
        %v1068 = vrot.slane %v702, 1
        %v1069 = vrot.slane %v703, 1
        %v1070 = vsel %vm518, %v1068, %v1069
        %v1071 = vrot.slane %v1024, 1
        %v1072 = vsel %vm518, %v1069, %v1071
        %v1073 = vrot.slane %v704, 1
        %v1074 = vrot.slane %v705, 1
        %v1075 = vsel %vm518, %v1073, %v1074
        %v1076 = vrot.slane %v1025, 1
        %v1077 = vsel %vm518, %v1074, %v1076
        %v1078 = vrot.slane %v706, 1
        %v1079 = vrot.slane %v707, 1
        %v1080 = vsel %vm518, %v1078, %v1079
        %v1081 = vrot.slane %v1026, 1
        %v1082 = vsel %vm518, %v1079, %v1081
        %v1083 = vrot.slane %v708, 1
        %v1084 = vrot.slane %v709, 1
        %v1085 = vsel %vm518, %v1083, %v1084
        %v1086 = vrot.slane %v1027, 1
        %v1087 = vsel %vm518, %v1084, %v1086
        %v1088 = vrot.slane %v710, 1
        %v1089 = vrot.slane %v711, 1
        %v1090 = vsel %vm518, %v1088, %v1089
        %v1091 = vrot.slane %v1028, 1
        %v1092 = vsel %vm518, %v1089, %v1091
        %s1109 = scalar_lea.vmem %s3, 128
        %v1110 = vld [vmem:[%s1109] sm:$0xff]
        %v1111 = vld [vmem:[%s1109 + $0x8] sm:$0xff]
        %v1112 = vld [vmem:[%s1109 + $0x10] sm:$0xff]
        %v1113 = vld [vmem:[%s1109 + $0x18] sm:$0xff]
        %v1114 = vld [vmem:[%s1109 + $0x20] sm:$0xff]
        %v1115 = vld [vmem:[%s1109 + $0x28] sm:$0xff]
        %v1116 = vld [vmem:[%s1109 + $0x30] sm:$0xff]
        %v1117 = vld [vmem:[%s1109 + $0x38] sm:$0xff]
        %v1118 = vld [vmem:[%s1109 + $0x40] sm:$0xff]
        %v1119 = vld [vmem:[%s1109 + $0x48] sm:$0xff]
        %v1120 = vld [vmem:[%s1109 + $0x50] sm:$0xff]
        %v1121 = vld [vmem:[%s1109 + $0x58] sm:$0xff]
        %v1122 = vld [vmem:[%s1109 + $0x60] sm:$0xff]
        %v1123 = vld [vmem:[%s1109 + $0x68] sm:$0xff]
        %v1124 = vld [vmem:[%s1109 + $0x70] sm:$0xff]
        %v1125 = vld [vmem:[%s1109 + $0x78] sm:$0xff]
        %1126 = vmatprep.subr.mxu0 0.0
        %1127 = vmatpush1.msra.mxu0 %v1110
        %1128 = vmatprep.subr.mxu0 0.0
        %1129 = vmatpush1.msra.mxu0 %v1111
        %1130 = vmatprep.subr.mxu0 0.0
        %1131 = vmatpush1.msra.mxu0 %v1112
        %1132 = vmatprep.subr.mxu0 0.0
        %1133 = vmatpush1.msra.mxu0 %v1113
        %1134 = vmatprep.subr.mxu0 0.0
        %1135 = vmatpush1.msra.mxu0 %v1114
        %1136 = vmatprep.subr.mxu0 0.0
        %1137 = vmatpush1.msra.mxu0 %v1115
        %1138 = vmatprep.subr.mxu0 0.0
        %1139 = vmatpush1.msra.mxu0 %v1116
        %1140 = vmatprep.subr.mxu0 0.0
        %1141 = vmatpush1.msra.mxu0 %v1117
        %1142 = vmatprep.subr.mxu0 0.0
        %1143 = vmatpush1.msra.mxu0 %v1118
        %1144 = vmatprep.subr.mxu0 0.0
        %1145 = vmatpush1.msra.mxu0 %v1119
        %1146 = vmatprep.subr.mxu0 0.0
        %1147 = vmatpush1.msra.mxu0 %v1120
        %1148 = vmatprep.subr.mxu0 0.0
        %1149 = vmatpush1.msra.mxu0 %v1121
        %1150 = vmatprep.subr.mxu0 0.0
        %1151 = vmatpush1.msra.mxu0 %v1122
        %1152 = vmatprep.subr.mxu0 0.0
        %1153 = vmatpush1.msra.mxu0 %v1123
        %1154 = vmatprep.subr.mxu0 0.0
        %1155 = vmatpush1.msra.mxu0 %v1124
        %1156 = vmatprep.subr.mxu0 0.0
        %1157 = vmatpush1.msra.mxu0 %v1125
        %1158 = vmatprep.subr.mxu0 0.0
        %1159 = vmatpush1.msra.mxu0 0.0
        %1160 = vmatprep.subr.mxu0 0.0
        %1161 = vmatpush1.msra.mxu0 0.0
        %1162 = vmatprep.subr.mxu0 0.0
        %1163 = vmatpush1.msra.mxu0 0.0
        %1164 = vmatprep.subr.mxu0 0.0
        %1165 = vmatpush1.msra.mxu0 0.0
        %1166 = vmatprep.subr.mxu0 0.0
        %1167 = vmatpush1.msra.mxu0 0.0
        %1168 = vmatprep.subr.mxu0 0.0
        %1169 = vmatpush1.msra.mxu0 0.0
        %1170 = vmatprep.subr.mxu0 0.0
        %1171 = vmatpush1.msra.mxu0 0.0
        %1172 = vmatprep.subr.mxu0 0.0
        %1173 = vmatpush1.msra.mxu0 0.0
        %1174 = vmatprep.subr.mxu0 0.0
        %1175 = vmatpush1.msra.mxu0 0.0
        %1176 = vmatprep.subr.mxu0 0.0
        %1177 = vmatpush1.msra.mxu0 0.0
        %1178 = vmatprep.subr.mxu0 0.0
        %1179 = vmatpush1.msra.mxu0 0.0
        %1180 = vmatprep.subr.mxu0 0.0
        %1181 = vmatpush1.msra.mxu0 0.0
        %1182 = vmatprep.subr.mxu0 0.0
        %1183 = vmatpush1.msra.mxu0 0.0
        %1184 = vmatprep.subr.mxu0 0.0
        %1185 = vmatpush1.msra.mxu0 0.0
        %1186 = vmatprep.subr.mxu0 0.0
        %1187 = vmatpush1.msra.mxu0 0.0
        %1188 = vmatprep.subr.mxu0 0.0
        %1189 = vmatpush1.msra.mxu0 0.0
        %1190 = vmatprep.mubr.f32.mxu0 0.0
        %1191 = vmatmul.mubr.f32.gmra.mrb[0].mxu0 %v1055
        %v1192 = vpop.f32.mrb[0].mxu0
        %v1193 = vadd.f32 0.0, %v1192
        %v1194 = vpop.f32.mrb[0].mxu0
        %1195 = vmatprep.mubr.f32.mxu0 0.0
        %1196 = vmatmul.mubr.f32.gmra.mrb[0].mxu0 %v1057
        %v1197 = vpop.f32.mrb[0].mxu0
        %v1198 = vadd.f32 0.0, %v1197
        %v1199 = vpop.f32.mrb[0].mxu0
        %1200 = vmatprep.mubr.f32.mxu0 0.0
        %1201 = vmatmul.mubr.f32.gmra.mrb[0].mxu0 %v1060
        %v1202 = vpop.f32.mrb[0].mxu0
        %v1203 = vadd.f32 0.0, %v1202
        %v1204 = vpop.f32.mrb[0].mxu0
        %1205 = vmatprep.mubr.f32.mxu0 0.0
        %1206 = vmatmul.mubr.f32.gmra.mrb[0].mxu0 %v1062
        %v1207 = vpop.f32.mrb[0].mxu0
        %v1208 = vadd.f32 0.0, %v1207
        %v1209 = vpop.f32.mrb[0].mxu0
        %1210 = vmatprep.mubr.f32.mxu0 0.0
        %1211 = vmatmul.mubr.f32.gmra.mrb[0].mxu0 %v1065
        %v1212 = vpop.f32.mrb[0].mxu0
        %v1213 = vadd.f32 0.0, %v1212
        %v1214 = vpop.f32.mrb[0].mxu0
        %1215 = vmatprep.mubr.f32.mxu0 0.0
        %1216 = vmatmul.mubr.f32.gmra.mrb[0].mxu0 %v1067
        %v1217 = vpop.f32.mrb[0].mxu0
        %v1218 = vadd.f32 0.0, %v1217
        %v1219 = vpop.f32.mrb[0].mxu0
        %1220 = vmatprep.mubr.f32.mxu0 0.0
        %1221 = vmatmul.mubr.f32.gmra.mrb[0].mxu0 %v1070
        %v1222 = vpop.f32.mrb[0].mxu0
        %v1223 = vadd.f32 0.0, %v1222
        %v1224 = vpop.f32.mrb[0].mxu0
        %1225 = vmatprep.mubr.f32.mxu0 0.0
        %1226 = vmatmul.mubr.f32.gmra.mrb[0].mxu0 %v1072
        %v1227 = vpop.f32.mrb[0].mxu0
        %v1228 = vadd.f32 0.0, %v1227
        %v1229 = vpop.f32.mrb[0].mxu0
        %1230 = vmatprep.mubr.f32.mxu0 0.0
        %1231 = vmatmul.mubr.f32.gmra.mrb[0].mxu0 %v1075
        %v1232 = vpop.f32.mrb[0].mxu0
        %v1233 = vadd.f32 0.0, %v1232
        %v1234 = vpop.f32.mrb[0].mxu0
        %1235 = vmatprep.mubr.f32.mxu0 0.0
        %1236 = vmatmul.mubr.f32.gmra.mrb[0].mxu0 %v1077
        %v1237 = vpop.f32.mrb[0].mxu0
        %v1238 = vadd.f32 0.0, %v1237
        %v1239 = vpop.f32.mrb[0].mxu0
        %1240 = vmatprep.mubr.f32.mxu0 0.0
        %1241 = vmatmul.mubr.f32.gmra.mrb[0].mxu0 %v1080
        %v1242 = vpop.f32.mrb[0].mxu0
        %v1243 = vadd.f32 0.0, %v1242
        %v1244 = vpop.f32.mrb[0].mxu0
        %1245 = vmatprep.mubr.f32.mxu0 0.0
        %1246 = vmatmul.mubr.f32.gmra.mrb[0].mxu0 %v1082
        %v1247 = vpop.f32.mrb[0].mxu0
        %v1248 = vadd.f32 0.0, %v1247
        %v1249 = vpop.f32.mrb[0].mxu0
        %1250 = vmatprep.mubr.f32.mxu0 0.0
        %1251 = vmatmul.mubr.f32.gmra.mrb[0].mxu0 %v1085
        %v1252 = vpop.f32.mrb[0].mxu0
        %v1253 = vadd.f32 0.0, %v1252
        %v1254 = vpop.f32.mrb[0].mxu0
        %1255 = vmatprep.mubr.f32.mxu0 0.0
        %1256 = vmatmul.mubr.f32.gmra.mrb[0].mxu0 %v1087
        %v1257 = vpop.f32.mrb[0].mxu0
        %v1258 = vadd.f32 0.0, %v1257
        %v1259 = vpop.f32.mrb[0].mxu0
        %1260 = vmatprep.mubr.f32.mxu0 0.0
        %1261 = vmatmul.mubr.f32.gmra.mrb[0].mxu0 %v1090
        %v1262 = vpop.f32.mrb[0].mxu0
        %v1263 = vadd.f32 0.0, %v1262
        %v1264 = vpop.f32.mrb[0].mxu0
        %1265 = vmatprep.mubr.f32.mxu0 0.0
        %1266 = vmatmul.mubr.f32.gmra.mrb[0].mxu0 %v1092
        %v1267 = vpop.f32.mrb[0].mxu0
        %v1268 = vadd.f32 0.0, %v1267
        %v1269 = vpop.f32.mrb[0].mxu0
        %1270 = vdwg.mxu0
        %v1271 = vmul.f32 %v1193, %v877
        %v1272 = vmul.f32 %v1198, %v877
        %v1273 = vmul.f32 %v1203, %v877
        %v1274 = vmul.f32 %v1208, %v877
        %v1275 = vmul.f32 %v1213, %v877
        %v1276 = vmul.f32 %v1218, %v877
        %v1277 = vmul.f32 %v1223, %v877
        %v1278 = vmul.f32 %v1228, %v877
        %v1279 = vmul.f32 %v1233, %v877
        %v1280 = vmul.f32 %v1238, %v877
        %v1281 = vmul.f32 %v1243, %v877
        %v1282 = vmul.f32 %v1248, %v877
        %v1283 = vmul.f32 %v1253, %v877
        %v1284 = vmul.f32 %v1258, %v877
        %v1285 = vmul.f32 %v1263, %v877
        %v1286 = vmul.f32 %v1268, %v877
        %v1287 = vadd.f32 %v1271, %v899
        %v1288 = vadd.f32 %v1272, %v899
        %v1289 = vadd.f32 %v1273, %v899
        %v1290 = vadd.f32 %v1274, %v899
        %v1291 = vadd.f32 %v1275, %v899
        %v1292 = vadd.f32 %v1276, %v899
        %v1293 = vadd.f32 %v1277, %v899
        %v1294 = vadd.f32 %v1278, %v899
        %v1295 = vadd.f32 %v1279, %v899
        %v1296 = vadd.f32 %v1280, %v899
        %v1297 = vadd.f32 %v1281, %v899
        %v1298 = vadd.f32 %v1282, %v899
        %v1299 = vadd.f32 %v1283, %v899
        %v1300 = vadd.f32 %v1284, %v899
        %v1301 = vadd.f32 %v1285, %v899
        %v1302 = vadd.f32 %v1286, %v899
        %v1303 = vmax.f32 %v1287, 0.0
        %v1304 = vmax.f32 %v1288, 0.0
        %v1305 = vmax.f32 %v1289, 0.0
        %v1306 = vmax.f32 %v1290, 0.0
        %v1307 = vmax.f32 %v1291, 0.0
        %v1308 = vmax.f32 %v1292, 0.0
        %v1309 = vmax.f32 %v1293, 0.0
        %v1310 = vmax.f32 %v1294, 0.0
        %v1311 = vmax.f32 %v1295, 0.0
        %v1312 = vmax.f32 %v1296, 0.0
        %v1313 = vmax.f32 %v1297, 0.0
        %v1314 = vmax.f32 %v1298, 0.0
        %v1315 = vmax.f32 %v1299, 0.0
        %v1316 = vmax.f32 %v1300, 0.0
        %v1317 = vmax.f32 %v1301, 0.0
        %v1318 = vmax.f32 %v1302, 0.0
        %1335 = vrot.lane.b32.xlu0 %v1303, 64
        %v1336 = vpop.permute.xlu0 %1335
        %1337 = vrot.lane.b32.xlu0 %v1304, 64
        %v1338 = vpop.permute.xlu0 %1337
        %1339 = vrot.lane.b32.xlu0 %v1305, 64
        %v1340 = vpop.permute.xlu0 %1339
        %1341 = vrot.lane.b32.xlu0 %v1306, 64
        %v1342 = vpop.permute.xlu0 %1341
        %1343 = vrot.lane.b32.xlu0 %v1307, 64
        %v1344 = vpop.permute.xlu0 %1343
        %1345 = vrot.lane.b32.xlu0 %v1308, 64
        %v1346 = vpop.permute.xlu0 %1345
        %1347 = vrot.lane.b32.xlu0 %v1309, 64
        %v1348 = vpop.permute.xlu0 %1347
        %1349 = vrot.lane.b32.xlu0 %v1310, 64
        %v1350 = vpop.permute.xlu0 %1349
        %1351 = vrot.lane.b32.xlu0 %v1311, 64
        %v1352 = vpop.permute.xlu0 %1351
        %1353 = vrot.lane.b32.xlu0 %v1312, 64
        %v1354 = vpop.permute.xlu0 %1353
        %1355 = vrot.lane.b32.xlu0 %v1313, 64
        %v1356 = vpop.permute.xlu0 %1355
        %1357 = vrot.lane.b32.xlu0 %v1314, 64
        %v1358 = vpop.permute.xlu0 %1357
        %1359 = vrot.lane.b32.xlu0 %v1315, 64
        %v1360 = vpop.permute.xlu0 %1359
        %1361 = vrot.lane.b32.xlu0 %v1316, 64
        %v1362 = vpop.permute.xlu0 %1361
        %1363 = vrot.lane.b32.xlu0 %v1317, 64
        %v1364 = vpop.permute.xlu0 %1363
        %1365 = vrot.lane.b32.xlu0 %v1318, 64
        %v1366 = vpop.permute.xlu0 %1365
        %v1383 = vsel %vm678, %v917, %v1336
        %v1384 = vsel %vm678, %v918, %v1338
        %v1385 = vsel %vm678, %v919, %v1340
        %v1386 = vsel %vm678, %v920, %v1342
        %v1387 = vsel %vm678, %v921, %v1344
        %v1388 = vsel %vm678, %v922, %v1346
        %v1389 = vsel %vm678, %v923, %v1348
        %v1390 = vsel %vm678, %v924, %v1350
        %v1391 = vsel %vm678, %v925, %v1352
        %v1392 = vsel %vm678, %v926, %v1354
        %v1393 = vsel %vm678, %v927, %v1356
        %v1394 = vsel %vm678, %v928, %v1358
        %v1395 = vsel %vm678, %v929, %v1360
        %v1396 = vsel %vm678, %v930, %v1362
        %v1397 = vsel %vm678, %v931, %v1364
        %v1398 = vsel %vm678, %v932, %v1366
        %1399 = vst [vmem:[%s361] sm:$0xff] %v1383
        %1400 = vst [vmem:[%s361 + $0x8] sm:$0xff] %v1384
        %1401 = vst [vmem:[%s361 + $0x20] sm:$0xff] %v1385
        %1402 = vst [vmem:[%s361 + $0x28] sm:$0xff] %v1386
        %1403 = vst [vmem:[%s361 + $0x40] sm:$0xff] %v1387
        %1404 = vst [vmem:[%s361 + $0x48] sm:$0xff] %v1388
        %1405 = vst [vmem:[%s361 + $0x60] sm:$0xff] %v1389
        %1406 = vst [vmem:[%s361 + $0x68] sm:$0xff] %v1390
        %1407 = vst [vmem:[%s361 + $0x80] sm:$0xff] %v1391
        %1408 = vst [vmem:[%s361 + $0x88] sm:$0xff] %v1392
        %1409 = vst [vmem:[%s361 + $0xa0] sm:$0xff] %v1393
        %1410 = vst [vmem:[%s361 + $0xa8] sm:$0xff] %v1394
        %1411 = vst [vmem:[%s361 + $0xc0] sm:$0xff] %v1395
        %1412 = vst [vmem:[%s361 + $0xc8] sm:$0xff] %v1396
        %1413 = vst [vmem:[%s361 + $0xe0] sm:$0xff] %v1397
        %1414 = vst [vmem:[%s361 + $0xe8] sm:$0xff] %v1398
        %1417 = vrot.lane.b32.xlu0 %v439, 32
        %v1418 = vpop.permute.xlu0 %1417
        %1419 = vrot.lane.b32.xlu0 %v440, 32
        %v1420 = vpop.permute.xlu0 %1419
        %1423 = vrot.lane.b32.xlu0 %v610, 64
        %v1424 = vpop.permute.xlu0 %1423
        %1425 = vrot.lane.b32.xlu0 %v612, 64
        %v1426 = vpop.permute.xlu0 %1425
        %v1430 = vrot.slane %v439, 1
        %v1431 = vrot.slane %v440, 1
        %v1432 = vsel %vm518, %v1430, %v1431
        %v1433 = vrot.slane %v441, 1
        %v1434 = vsel %vm518, %v1431, %v1433
        %1435 = vrot.lane.b32.xlu0 %v1432, 96
        %v1436 = vpop.permute.xlu0 %1435
        %1437 = vrot.lane.b32.xlu0 %v1434, 96
        %v1438 = vpop.permute.xlu0 %1437
        %v1441 = vsel %vm661, %v436, %v1418
        %v1442 = vsel %vm661, %v437, %v1420
        %v1443 = vsel %vm678, %v1441, %v1424
        %v1444 = vsel %vm678, %v1442, %v1426
        %v1445 = vsel %vm695, %v1443, %v1436
        %v1446 = vsel %vm695, %v1444, %v1438
        %s1447 = scalar_lea.vmem %s3, 256
        %v1448 = vld [vmem:[%s1447] sm:$0xff]
        %v1449 = vld [vmem:[%s1447 + $0x8] sm:$0xff]
        %v1450 = vld [vmem:[%s1447 + $0x10] sm:$0xff]
        %v1451 = vld [vmem:[%s1447 + $0x18] sm:$0xff]
        %v1452 = vld [vmem:[%s1447 + $0x20] sm:$0xff]
        %v1453 = vld [vmem:[%s1447 + $0x28] sm:$0xff]
        %v1454 = vld [vmem:[%s1447 + $0x30] sm:$0xff]
        %v1455 = vld [vmem:[%s1447 + $0x38] sm:$0xff]
        %v1456 = vld [vmem:[%s1447 + $0x40] sm:$0xff]
        %v1457 = vld [vmem:[%s1447 + $0x48] sm:$0xff]
        %v1458 = vld [vmem:[%s1447 + $0x50] sm:$0xff]
        %v1459 = vld [vmem:[%s1447 + $0x58] sm:$0xff]
        %v1460 = vld [vmem:[%s1447 + $0x60] sm:$0xff]
        %v1461 = vld [vmem:[%s1447 + $0x68] sm:$0xff]
        %v1462 = vld [vmem:[%s1447 + $0x70] sm:$0xff]
        %v1463 = vld [vmem:[%s1447 + $0x78] sm:$0xff]
        %1464 = vmatprep.subr.mxu0 0.0
        %1465 = vmatpush1.msra.mxu0 %v1448
        %1466 = vmatprep.subr.mxu0 0.0
        %1467 = vmatpush1.msra.mxu0 %v1449
        %1468 = vmatprep.subr.mxu0 0.0
        %1469 = vmatpush1.msra.mxu0 %v1450
        %1470 = vmatprep.subr.mxu0 0.0
        %1471 = vmatpush1.msra.mxu0 %v1451
        %1472 = vmatprep.subr.mxu0 0.0
        %1473 = vmatpush1.msra.mxu0 %v1452
        %1474 = vmatprep.subr.mxu0 0.0
        %1475 = vmatpush1.msra.mxu0 %v1453
        %1476 = vmatprep.subr.mxu0 0.0
        %1477 = vmatpush1.msra.mxu0 %v1454
        %1478 = vmatprep.subr.mxu0 0.0
        %1479 = vmatpush1.msra.mxu0 %v1455
        %1480 = vmatprep.subr.mxu0 0.0
        %1481 = vmatpush1.msra.mxu0 %v1456
        %1482 = vmatprep.subr.mxu0 0.0
        %1483 = vmatpush1.msra.mxu0 %v1457
        %1484 = vmatprep.subr.mxu0 0.0
        %1485 = vmatpush1.msra.mxu0 %v1458
        %1486 = vmatprep.subr.mxu0 0.0
        %1487 = vmatpush1.msra.mxu0 %v1459
        %1488 = vmatprep.subr.mxu0 0.0
        %1489 = vmatpush1.msra.mxu0 %v1460
        %1490 = vmatprep.subr.mxu0 0.0
        %1491 = vmatpush1.msra.mxu0 %v1461
        %1492 = vmatprep.subr.mxu0 0.0
        %1493 = vmatpush1.msra.mxu0 %v1462
        %1494 = vmatprep.subr.mxu0 0.0
        %1495 = vmatpush1.msra.mxu0 %v1463
        %1496 = vmatprep.subr.mxu0 0.0
        %1497 = vmatpush1.msra.mxu0 0.0
        %1498 = vmatprep.subr.mxu0 0.0
        %1499 = vmatpush1.msra.mxu0 0.0
        %1500 = vmatprep.subr.mxu0 0.0
        %1501 = vmatpush1.msra.mxu0 0.0
        %1502 = vmatprep.subr.mxu0 0.0
        %1503 = vmatpush1.msra.mxu0 0.0
        %1504 = vmatprep.subr.mxu0 0.0
        %1505 = vmatpush1.msra.mxu0 0.0
        %1506 = vmatprep.subr.mxu0 0.0
        %1507 = vmatpush1.msra.mxu0 0.0
        %1508 = vmatprep.subr.mxu0 0.0
        %1509 = vmatpush1.msra.mxu0 0.0
        %1510 = vmatprep.subr.mxu0 0.0
        %1511 = vmatpush1.msra.mxu0 0.0
        %1512 = vmatprep.subr.mxu0 0.0
        %1513 = vmatpush1.msra.mxu0 0.0
        %1514 = vmatprep.subr.mxu0 0.0
        %1515 = vmatpush1.msra.mxu0 0.0
        %1516 = vmatprep.subr.mxu0 0.0
        %1517 = vmatpush1.msra.mxu0 0.0
        %1518 = vmatprep.subr.mxu0 0.0
        %1519 = vmatpush1.msra.mxu0 0.0
        %1520 = vmatprep.subr.mxu0 0.0
        %1521 = vmatpush1.msra.mxu0 0.0
        %1522 = vmatprep.subr.mxu0 0.0
        %1523 = vmatpush1.msra.mxu0 0.0
        %1524 = vmatprep.subr.mxu0 0.0
        %1525 = vmatpush1.msra.mxu0 0.0
        %1526 = vmatprep.subr.mxu0 0.0
        %1527 = vmatpush1.msra.mxu0 0.0
        %1528 = vmatprep.mubr.f32.mxu0 0.0
        %1529 = vmatmul.mubr.f32.gmra.mrb[0].mxu0 %v698
        %v1530 = vpop.f32.mrb[0].mxu0
        %v1531 = vadd.f32 0.0, %v1530
        %v1532 = vpop.f32.mrb[0].mxu0
        %1533 = vmatprep.mubr.f32.mxu0 0.0
        %1534 = vmatmul.mubr.f32.gmra.mrb[0].mxu0 %v699
        %v1535 = vpop.f32.mrb[0].mxu0
        %v1536 = vadd.f32 0.0, %v1535
        %v1537 = vpop.f32.mrb[0].mxu0
        %1538 = vmatprep.mubr.f32.mxu0 0.0
        %1539 = vmatmul.mubr.f32.gmra.mrb[0].mxu0 %v700
        %v1540 = vpop.f32.mrb[0].mxu0
        %v1541 = vadd.f32 0.0, %v1540
        %v1542 = vpop.f32.mrb[0].mxu0
        %1543 = vmatprep.mubr.f32.mxu0 0.0
        %1544 = vmatmul.mubr.f32.gmra.mrb[0].mxu0 %v701
        %v1545 = vpop.f32.mrb[0].mxu0
        %v1546 = vadd.f32 0.0, %v1545
        %v1547 = vpop.f32.mrb[0].mxu0
        %1548 = vmatprep.mubr.f32.mxu0 0.0
        %1549 = vmatmul.mubr.f32.gmra.mrb[0].mxu0 %v702
        %v1550 = vpop.f32.mrb[0].mxu0
        %v1551 = vadd.f32 0.0, %v1550
        %v1552 = vpop.f32.mrb[0].mxu0
        %1553 = vmatprep.mubr.f32.mxu0 0.0
        %1554 = vmatmul.mubr.f32.gmra.mrb[0].mxu0 %v703
        %v1555 = vpop.f32.mrb[0].mxu0
        %v1556 = vadd.f32 0.0, %v1555
        %v1557 = vpop.f32.mrb[0].mxu0
        %1558 = vmatprep.mubr.f32.mxu0 0.0
        %1559 = vmatmul.mubr.f32.gmra.mrb[0].mxu0 %v704
        %v1560 = vpop.f32.mrb[0].mxu0
        %v1561 = vadd.f32 0.0, %v1560
        %v1562 = vpop.f32.mrb[0].mxu0
        %1563 = vmatprep.mubr.f32.mxu0 0.0
        %1564 = vmatmul.mubr.f32.gmra.mrb[0].mxu0 %v705
        %v1565 = vpop.f32.mrb[0].mxu0
        %v1566 = vadd.f32 0.0, %v1565
        %v1567 = vpop.f32.mrb[0].mxu0
        %1568 = vmatprep.mubr.f32.mxu0 0.0
        %1569 = vmatmul.mubr.f32.gmra.mrb[0].mxu0 %v706
        %v1570 = vpop.f32.mrb[0].mxu0
        %v1571 = vadd.f32 0.0, %v1570
        %v1572 = vpop.f32.mrb[0].mxu0
        %1573 = vmatprep.mubr.f32.mxu0 0.0
        %1574 = vmatmul.mubr.f32.gmra.mrb[0].mxu0 %v707
        %v1575 = vpop.f32.mrb[0].mxu0
        %v1576 = vadd.f32 0.0, %v1575
        %v1577 = vpop.f32.mrb[0].mxu0
        %1578 = vmatprep.mubr.f32.mxu0 0.0
        %1579 = vmatmul.mubr.f32.gmra.mrb[0].mxu0 %v708
        %v1580 = vpop.f32.mrb[0].mxu0
        %v1581 = vadd.f32 0.0, %v1580
        %v1582 = vpop.f32.mrb[0].mxu0
        %1583 = vmatprep.mubr.f32.mxu0 0.0
        %1584 = vmatmul.mubr.f32.gmra.mrb[0].mxu0 %v709
        %v1585 = vpop.f32.mrb[0].mxu0
        %v1586 = vadd.f32 0.0, %v1585
        %v1587 = vpop.f32.mrb[0].mxu0
        %1588 = vmatprep.mubr.f32.mxu0 0.0
        %1589 = vmatmul.mubr.f32.gmra.mrb[0].mxu0 %v710
        %v1590 = vpop.f32.mrb[0].mxu0
        %v1591 = vadd.f32 0.0, %v1590
        %v1592 = vpop.f32.mrb[0].mxu0
        %1593 = vmatprep.mubr.f32.mxu0 0.0
        %1594 = vmatmul.mubr.f32.gmra.mrb[0].mxu0 %v711
        %v1595 = vpop.f32.mrb[0].mxu0
        %v1596 = vadd.f32 0.0, %v1595
        %v1597 = vpop.f32.mrb[0].mxu0
        %1598 = vmatprep.mubr.f32.mxu0 0.0
        %1599 = vmatmul.mubr.f32.gmra.mrb[0].mxu0 %v1445
        %v1600 = vpop.f32.mrb[0].mxu0
        %v1601 = vadd.f32 0.0, %v1600
        %v1602 = vpop.f32.mrb[0].mxu0
        %1603 = vmatprep.mubr.f32.mxu0 0.0
        %1604 = vmatmul.mubr.f32.gmra.mrb[0].mxu0 %v1446
        %v1605 = vpop.f32.mrb[0].mxu0
        %v1606 = vadd.f32 0.0, %v1605
        %v1607 = vpop.f32.mrb[0].mxu0
        %1608 = vdwg.mxu0
        %v1609 = vmul.f32 %v1531, %v877
        %v1610 = vmul.f32 %v1536, %v877
        %v1611 = vmul.f32 %v1541, %v877
        %v1612 = vmul.f32 %v1546, %v877
        %v1613 = vmul.f32 %v1551, %v877
        %v1614 = vmul.f32 %v1556, %v877
        %v1615 = vmul.f32 %v1561, %v877
        %v1616 = vmul.f32 %v1566, %v877
        %v1617 = vmul.f32 %v1571, %v877
        %v1618 = vmul.f32 %v1576, %v877
        %v1619 = vmul.f32 %v1581, %v877
        %v1620 = vmul.f32 %v1586, %v877
        %v1621 = vmul.f32 %v1591, %v877
        %v1622 = vmul.f32 %v1596, %v877
        %v1623 = vmul.f32 %v1601, %v877
        %v1624 = vmul.f32 %v1606, %v877
        %v1625 = vadd.f32 %v1609, %v899
        %v1626 = vadd.f32 %v1610, %v899
        %v1627 = vadd.f32 %v1611, %v899
        %v1628 = vadd.f32 %v1612, %v899
        %v1629 = vadd.f32 %v1613, %v899
        %v1630 = vadd.f32 %v1614, %v899
        %v1631 = vadd.f32 %v1615, %v899
        %v1632 = vadd.f32 %v1616, %v899
        %v1633 = vadd.f32 %v1617, %v899
        %v1634 = vadd.f32 %v1618, %v899
        %v1635 = vadd.f32 %v1619, %v899
        %v1636 = vadd.f32 %v1620, %v899
        %v1637 = vadd.f32 %v1621, %v899
        %v1638 = vadd.f32 %v1622, %v899
        %v1639 = vadd.f32 %v1623, %v899
        %v1640 = vadd.f32 %v1624, %v899
        %v1641 = vmax.f32 %v1625, 0.0
        %v1642 = vmax.f32 %v1626, 0.0
        %v1643 = vmax.f32 %v1627, 0.0
        %v1644 = vmax.f32 %v1628, 0.0
        %v1645 = vmax.f32 %v1629, 0.0
        %v1646 = vmax.f32 %v1630, 0.0
        %v1647 = vmax.f32 %v1631, 0.0
        %v1648 = vmax.f32 %v1632, 0.0
        %v1649 = vmax.f32 %v1633, 0.0
        %v1650 = vmax.f32 %v1634, 0.0
        %v1651 = vmax.f32 %v1635, 0.0
        %v1652 = vmax.f32 %v1636, 0.0
        %v1653 = vmax.f32 %v1637, 0.0
        %v1654 = vmax.f32 %v1638, 0.0
        %v1655 = vmax.f32 %v1639, 0.0
        %v1656 = vmax.f32 %v1640, 0.0
        %1657 = vrot.lane.b32.xlu0 %v441, 32
        %v1658 = vpop.permute.xlu0 %1657
        %1660 = vrot.lane.b32.xlu0 %v611, 64
        %v1661 = vpop.permute.xlu0 %1660
        %1663 = vrot.lane.b32.xlu0 %v1433, 96
        %v1664 = vpop.permute.xlu0 %1663
        %v1666 = vsel %vm661, %v438, %v1658
        %v1667 = vsel %vm678, %v1666, %v1661
        %v1668 = vsel %vm695, %v1667, %v1664
        %v1672 = vrot.slane %v1445, 1
        %v1673 = vrot.slane %v1446, 1
        %v1674 = vsel %vm518, %v1672, %v1673
        %v1675 = vrot.slane %v1668, 1
        %v1676 = vsel %vm518, %v1673, %v1675
        %s1679 = scalar_lea.vmem %s3, 384
        %v1680 = vld [vmem:[%s1679] sm:$0xff]
        %v1681 = vld [vmem:[%s1679 + $0x8] sm:$0xff]
        %v1682 = vld [vmem:[%s1679 + $0x10] sm:$0xff]
        %v1683 = vld [vmem:[%s1679 + $0x18] sm:$0xff]
        %v1684 = vld [vmem:[%s1679 + $0x20] sm:$0xff]
        %v1685 = vld [vmem:[%s1679 + $0x28] sm:$0xff]
        %v1686 = vld [vmem:[%s1679 + $0x30] sm:$0xff]
        %v1687 = vld [vmem:[%s1679 + $0x38] sm:$0xff]
        %v1688 = vld [vmem:[%s1679 + $0x40] sm:$0xff]
        %v1689 = vld [vmem:[%s1679 + $0x48] sm:$0xff]
        %v1690 = vld [vmem:[%s1679 + $0x50] sm:$0xff]
        %v1691 = vld [vmem:[%s1679 + $0x58] sm:$0xff]
        %v1692 = vld [vmem:[%s1679 + $0x60] sm:$0xff]
        %v1693 = vld [vmem:[%s1679 + $0x68] sm:$0xff]
        %v1694 = vld [vmem:[%s1679 + $0x70] sm:$0xff]
        %v1695 = vld [vmem:[%s1679 + $0x78] sm:$0xff]
        %1696 = vmatprep.subr.mxu0 0.0
        %1697 = vmatpush1.msra.mxu0 %v1680
        %1698 = vmatprep.subr.mxu0 0.0
        %1699 = vmatpush1.msra.mxu0 %v1681
        %1700 = vmatprep.subr.mxu0 0.0
        %1701 = vmatpush1.msra.mxu0 %v1682
        %1702 = vmatprep.subr.mxu0 0.0
        %1703 = vmatpush1.msra.mxu0 %v1683
        %1704 = vmatprep.subr.mxu0 0.0
        %1705 = vmatpush1.msra.mxu0 %v1684
        %1706 = vmatprep.subr.mxu0 0.0
        %1707 = vmatpush1.msra.mxu0 %v1685
        %1708 = vmatprep.subr.mxu0 0.0
        %1709 = vmatpush1.msra.mxu0 %v1686
        %1710 = vmatprep.subr.mxu0 0.0
        %1711 = vmatpush1.msra.mxu0 %v1687
        %1712 = vmatprep.subr.mxu0 0.0
        %1713 = vmatpush1.msra.mxu0 %v1688
        %1714 = vmatprep.subr.mxu0 0.0
        %1715 = vmatpush1.msra.mxu0 %v1689
        %1716 = vmatprep.subr.mxu0 0.0
        %1717 = vmatpush1.msra.mxu0 %v1690
        %1718 = vmatprep.subr.mxu0 0.0
        %1719 = vmatpush1.msra.mxu0 %v1691
        %1720 = vmatprep.subr.mxu0 0.0
        %1721 = vmatpush1.msra.mxu0 %v1692
        %1722 = vmatprep.subr.mxu0 0.0
        %1723 = vmatpush1.msra.mxu0 %v1693
        %1724 = vmatprep.subr.mxu0 0.0
        %1725 = vmatpush1.msra.mxu0 %v1694
        %1726 = vmatprep.subr.mxu0 0.0
        %1727 = vmatpush1.msra.mxu0 %v1695
        %1728 = vmatprep.subr.mxu0 0.0
        %1729 = vmatpush1.msra.mxu0 0.0
        %1730 = vmatprep.subr.mxu0 0.0
        %1731 = vmatpush1.msra.mxu0 0.0
        %1732 = vmatprep.subr.mxu0 0.0
        %1733 = vmatpush1.msra.mxu0 0.0
        %1734 = vmatprep.subr.mxu0 0.0
        %1735 = vmatpush1.msra.mxu0 0.0
        %1736 = vmatprep.subr.mxu0 0.0
        %1737 = vmatpush1.msra.mxu0 0.0
        %1738 = vmatprep.subr.mxu0 0.0
        %1739 = vmatpush1.msra.mxu0 0.0
        %1740 = vmatprep.subr.mxu0 0.0
        %1741 = vmatpush1.msra.mxu0 0.0
        %1742 = vmatprep.subr.mxu0 0.0
        %1743 = vmatpush1.msra.mxu0 0.0
        %1744 = vmatprep.subr.mxu0 0.0
        %1745 = vmatpush1.msra.mxu0 0.0
        %1746 = vmatprep.subr.mxu0 0.0
        %1747 = vmatpush1.msra.mxu0 0.0
        %1748 = vmatprep.subr.mxu0 0.0
        %1749 = vmatpush1.msra.mxu0 0.0
        %1750 = vmatprep.subr.mxu0 0.0
        %1751 = vmatpush1.msra.mxu0 0.0
        %1752 = vmatprep.subr.mxu0 0.0
        %1753 = vmatpush1.msra.mxu0 0.0
        %1754 = vmatprep.subr.mxu0 0.0
        %1755 = vmatpush1.msra.mxu0 0.0
        %1756 = vmatprep.subr.mxu0 0.0
        %1757 = vmatpush1.msra.mxu0 0.0
        %1758 = vmatprep.subr.mxu0 0.0
        %1759 = vmatpush1.msra.mxu0 0.0
        %1760 = vmatprep.mubr.f32.mxu0 0.0
        %1761 = vmatmul.mubr.f32.gmra.mrb[0].mxu0 %v1060
        %v1762 = vpop.f32.mrb[0].mxu0
        %v1763 = vadd.f32 0.0, %v1762
        %v1764 = vpop.f32.mrb[0].mxu0
        %1765 = vmatprep.mubr.f32.mxu0 0.0
        %1766 = vmatmul.mubr.f32.gmra.mrb[0].mxu0 %v1062
        %v1767 = vpop.f32.mrb[0].mxu0
        %v1768 = vadd.f32 0.0, %v1767
        %v1769 = vpop.f32.mrb[0].mxu0
        %1770 = vmatprep.mubr.f32.mxu0 0.0
        %1771 = vmatmul.mubr.f32.gmra.mrb[0].mxu0 %v1065
        %v1772 = vpop.f32.mrb[0].mxu0
        %v1773 = vadd.f32 0.0, %v1772
        %v1774 = vpop.f32.mrb[0].mxu0
        %1775 = vmatprep.mubr.f32.mxu0 0.0
        %1776 = vmatmul.mubr.f32.gmra.mrb[0].mxu0 %v1067
        %v1777 = vpop.f32.mrb[0].mxu0
        %v1778 = vadd.f32 0.0, %v1777
        %v1779 = vpop.f32.mrb[0].mxu0
        %1780 = vmatprep.mubr.f32.mxu0 0.0
        %1781 = vmatmul.mubr.f32.gmra.mrb[0].mxu0 %v1070
        %v1782 = vpop.f32.mrb[0].mxu0
        %v1783 = vadd.f32 0.0, %v1782
        %v1784 = vpop.f32.mrb[0].mxu0
        %1785 = vmatprep.mubr.f32.mxu0 0.0
        %1786 = vmatmul.mubr.f32.gmra.mrb[0].mxu0 %v1072
        %v1787 = vpop.f32.mrb[0].mxu0
        %v1788 = vadd.f32 0.0, %v1787
        %v1789 = vpop.f32.mrb[0].mxu0
        %1790 = vmatprep.mubr.f32.mxu0 0.0
        %1791 = vmatmul.mubr.f32.gmra.mrb[0].mxu0 %v1075
        %v1792 = vpop.f32.mrb[0].mxu0
        %v1793 = vadd.f32 0.0, %v1792
        %v1794 = vpop.f32.mrb[0].mxu0
        %1795 = vmatprep.mubr.f32.mxu0 0.0
        %1796 = vmatmul.mubr.f32.gmra.mrb[0].mxu0 %v1077
        %v1797 = vpop.f32.mrb[0].mxu0
        %v1798 = vadd.f32 0.0, %v1797
        %v1799 = vpop.f32.mrb[0].mxu0
        %1800 = vmatprep.mubr.f32.mxu0 0.0
        %1801 = vmatmul.mubr.f32.gmra.mrb[0].mxu0 %v1080
        %v1802 = vpop.f32.mrb[0].mxu0
        %v1803 = vadd.f32 0.0, %v1802
        %v1804 = vpop.f32.mrb[0].mxu0
        %1805 = vmatprep.mubr.f32.mxu0 0.0
        %1806 = vmatmul.mubr.f32.gmra.mrb[0].mxu0 %v1082
        %v1807 = vpop.f32.mrb[0].mxu0
        %v1808 = vadd.f32 0.0, %v1807
        %v1809 = vpop.f32.mrb[0].mxu0
        %1810 = vmatprep.mubr.f32.mxu0 0.0
        %1811 = vmatmul.mubr.f32.gmra.mrb[0].mxu0 %v1085
        %v1812 = vpop.f32.mrb[0].mxu0
        %v1813 = vadd.f32 0.0, %v1812
        %v1814 = vpop.f32.mrb[0].mxu0
        %1815 = vmatprep.mubr.f32.mxu0 0.0
        %1816 = vmatmul.mubr.f32.gmra.mrb[0].mxu0 %v1087
        %v1817 = vpop.f32.mrb[0].mxu0
        %v1818 = vadd.f32 0.0, %v1817
        %v1819 = vpop.f32.mrb[0].mxu0
        %1820 = vmatprep.mubr.f32.mxu0 0.0
        %1821 = vmatmul.mubr.f32.gmra.mrb[0].mxu0 %v1090
        %v1822 = vpop.f32.mrb[0].mxu0
        %v1823 = vadd.f32 0.0, %v1822
        %v1824 = vpop.f32.mrb[0].mxu0
        %1825 = vmatprep.mubr.f32.mxu0 0.0
        %1826 = vmatmul.mubr.f32.gmra.mrb[0].mxu0 %v1092
        %v1827 = vpop.f32.mrb[0].mxu0
        %v1828 = vadd.f32 0.0, %v1827
        %v1829 = vpop.f32.mrb[0].mxu0
        %1830 = vmatprep.mubr.f32.mxu0 0.0
        %1831 = vmatmul.mubr.f32.gmra.mrb[0].mxu0 %v1674
        %v1832 = vpop.f32.mrb[0].mxu0
        %v1833 = vadd.f32 0.0, %v1832
        %v1834 = vpop.f32.mrb[0].mxu0
        %1835 = vmatprep.mubr.f32.mxu0 0.0
        %1836 = vmatmul.mubr.f32.gmra.mrb[0].mxu0 %v1676
        %v1837 = vpop.f32.mrb[0].mxu0
        %v1838 = vadd.f32 0.0, %v1837
        %v1839 = vpop.f32.mrb[0].mxu0
        %1840 = vdwg.mxu0
        %v1841 = vmul.f32 %v1763, %v877
        %v1842 = vmul.f32 %v1768, %v877
        %v1843 = vmul.f32 %v1773, %v877
        %v1844 = vmul.f32 %v1778, %v877
        %v1845 = vmul.f32 %v1783, %v877
        %v1846 = vmul.f32 %v1788, %v877
        %v1847 = vmul.f32 %v1793, %v877
        %v1848 = vmul.f32 %v1798, %v877
        %v1849 = vmul.f32 %v1803, %v877
        %v1850 = vmul.f32 %v1808, %v877
        %v1851 = vmul.f32 %v1813, %v877
        %v1852 = vmul.f32 %v1818, %v877
        %v1853 = vmul.f32 %v1823, %v877
        %v1854 = vmul.f32 %v1828, %v877
        %v1855 = vmul.f32 %v1833, %v877
        %v1856 = vmul.f32 %v1838, %v877
        %v1857 = vadd.f32 %v1841, %v899
        %v1858 = vadd.f32 %v1842, %v899
        %v1859 = vadd.f32 %v1843, %v899
        %v1860 = vadd.f32 %v1844, %v899
        %v1861 = vadd.f32 %v1845, %v899
        %v1862 = vadd.f32 %v1846, %v899
        %v1863 = vadd.f32 %v1847, %v899
        %v1864 = vadd.f32 %v1848, %v899
        %v1865 = vadd.f32 %v1849, %v899
        %v1866 = vadd.f32 %v1850, %v899
        %v1867 = vadd.f32 %v1851, %v899
        %v1868 = vadd.f32 %v1852, %v899
        %v1869 = vadd.f32 %v1853, %v899
        %v1870 = vadd.f32 %v1854, %v899
        %v1871 = vadd.f32 %v1855, %v899
        %v1872 = vadd.f32 %v1856, %v899
        %v1873 = vmax.f32 %v1857, 0.0
        %v1874 = vmax.f32 %v1858, 0.0
        %v1875 = vmax.f32 %v1859, 0.0
        %v1876 = vmax.f32 %v1860, 0.0
        %v1877 = vmax.f32 %v1861, 0.0
        %v1878 = vmax.f32 %v1862, 0.0
        %v1879 = vmax.f32 %v1863, 0.0
        %v1880 = vmax.f32 %v1864, 0.0
        %v1881 = vmax.f32 %v1865, 0.0
        %v1882 = vmax.f32 %v1866, 0.0
        %v1883 = vmax.f32 %v1867, 0.0
        %v1884 = vmax.f32 %v1868, 0.0
        %v1885 = vmax.f32 %v1869, 0.0
        %v1886 = vmax.f32 %v1870, 0.0
        %v1887 = vmax.f32 %v1871, 0.0
        %v1888 = vmax.f32 %v1872, 0.0
        %1905 = vrot.lane.b32.xlu0 %v1873, 64
        %v1906 = vpop.permute.xlu0 %1905
        %1907 = vrot.lane.b32.xlu0 %v1874, 64
        %v1908 = vpop.permute.xlu0 %1907
        %1909 = vrot.lane.b32.xlu0 %v1875, 64
        %v1910 = vpop.permute.xlu0 %1909
        %1911 = vrot.lane.b32.xlu0 %v1876, 64
        %v1912 = vpop.permute.xlu0 %1911
        %1913 = vrot.lane.b32.xlu0 %v1877, 64
        %v1914 = vpop.permute.xlu0 %1913
        %1915 = vrot.lane.b32.xlu0 %v1878, 64
        %v1916 = vpop.permute.xlu0 %1915
        %1917 = vrot.lane.b32.xlu0 %v1879, 64
        %v1918 = vpop.permute.xlu0 %1917
        %1919 = vrot.lane.b32.xlu0 %v1880, 64
        %v1920 = vpop.permute.xlu0 %1919
        %1921 = vrot.lane.b32.xlu0 %v1881, 64
        %v1922 = vpop.permute.xlu0 %1921
        %1923 = vrot.lane.b32.xlu0 %v1882, 64
        %v1924 = vpop.permute.xlu0 %1923
        %1925 = vrot.lane.b32.xlu0 %v1883, 64
        %v1926 = vpop.permute.xlu0 %1925
        %1927 = vrot.lane.b32.xlu0 %v1884, 64
        %v1928 = vpop.permute.xlu0 %1927
        %1929 = vrot.lane.b32.xlu0 %v1885, 64
        %v1930 = vpop.permute.xlu0 %1929
        %1931 = vrot.lane.b32.xlu0 %v1886, 64
        %v1932 = vpop.permute.xlu0 %1931
        %1933 = vrot.lane.b32.xlu0 %v1887, 64
        %v1934 = vpop.permute.xlu0 %1933
        %1935 = vrot.lane.b32.xlu0 %v1888, 64
        %v1936 = vpop.permute.xlu0 %1935
        %v1953 = vsel %vm678, %v1641, %v1906
        %v1954 = vsel %vm678, %v1642, %v1908
        %v1955 = vsel %vm678, %v1643, %v1910
        %v1956 = vsel %vm678, %v1644, %v1912
        %v1957 = vsel %vm678, %v1645, %v1914
        %v1958 = vsel %vm678, %v1646, %v1916
        %v1959 = vsel %vm678, %v1647, %v1918
        %v1960 = vsel %vm678, %v1648, %v1920
        %v1961 = vsel %vm678, %v1649, %v1922
        %v1962 = vsel %vm678, %v1650, %v1924
        %v1963 = vsel %vm678, %v1651, %v1926
        %v1964 = vsel %vm678, %v1652, %v1928
        %v1965 = vsel %vm678, %v1653, %v1930
        %v1966 = vsel %vm678, %v1654, %v1932
        %v1967 = vsel %vm678, %v1655, %v1934
        %v1968 = vsel %vm678, %v1656, %v1936
        %s1969 = scalar_lea.vmem %s361, 16 [#allocation2]
        %1970 = vst [vmem:[%s1969] sm:$0xff] %v1953
        %1971 = vst [vmem:[%s1969 + $0x8] sm:$0xff] %v1954
        %1972 = vst [vmem:[%s1969 + $0x20] sm:$0xff] %v1955
        %1973 = vst [vmem:[%s1969 + $0x28] sm:$0xff] %v1956
        %1974 = vst [vmem:[%s1969 + $0x40] sm:$0xff] %v1957
        %1975 = vst [vmem:[%s1969 + $0x48] sm:$0xff] %v1958
        %1976 = vst [vmem:[%s1969 + $0x60] sm:$0xff] %v1959
        %1977 = vst [vmem:[%s1969 + $0x68] sm:$0xff] %v1960
        %1978 = vst [vmem:[%s1969 + $0x80] sm:$0xff] %v1961
        %1979 = vst [vmem:[%s1969 + $0x88] sm:$0xff] %v1962
        %1980 = vst [vmem:[%s1969 + $0xa0] sm:$0xff] %v1963
        %1981 = vst [vmem:[%s1969 + $0xa8] sm:$0xff] %v1964
        %1982 = vst [vmem:[%s1969 + $0xc0] sm:$0xff] %v1965
        %1983 = vst [vmem:[%s1969 + $0xc8] sm:$0xff] %v1966
        %1984 = vst [vmem:[%s1969 + $0xe0] sm:$0xff] %v1967
        %1985 = vst [vmem:[%s1969 + $0xe8] sm:$0xff] %v1968
        %s1986 = sand.u32 %s199, 1
        %s1987 = scalar_lea.sflag [#allocation3], %s1986
        %s1988 = sand.u32 %s199, 1
        %s1989 = smul.addr %s1988, 256
        %s1990 = scalar_lea.vmem [#allocation2], %s1989
        // Predicated region
        $region45: #{tpu_custom_call.1} parent=43 // pred_check
          %p1991 = pneg %p209
        $region46: #{tpu_custom_call.1} parent=43 // pred_check_branch
          %1993 = sbr.rel (%p1991) target = $region48
        $region47: #{tpu_custom_call.1} parent=43 // pred_region
          %s1994 = smul.u32 8, %s25
          %s1996 = ssub.s32 4096, 4096
          %1997 = vsyncadd %s1987, %s1996
          %s1998 = smul.addr %s1994, 4
          %s1999 = smul.addr %s24, 64
          %s2000 = sadd.s32 %s1998, %s1999
          %s2001 = smul.addr %s2000, 128
          %s2002 = scalar_lea.hbm %s6, %s2001
          %s2003 = sshll.u32 %s1990, 4
          %s2004 = int_to_ptr.vmem [resolvable:$true] %s2003
          %2009 = dma.vmem_to_hbm [thread:$0]  %s2004, 4096, %s2002, %s1987, 128, 128, 8
        $region48: #{tpu_custom_call.1} parent=43 // pred_fallthru
          _
      $region44: #{tpu_custom_call.1} parent=5 // pred_fallthru
        _
      %p2010 = scmp.le.s32.totalorder 2, %s15
      // Predicated region
      $region49: #{tpu_custom_call.1} parent=5 // pred_check
        %p2011 = pneg %p2010
      $region50: #{tpu_custom_call.1} parent=5 // pred_check_branch
        %2013 = sbr.rel (%p2011) target = $region52
      $region51: #{tpu_custom_call.1} parent=5 // pred_region
        %s2014 = ssub.s32 %s15, 2
        // Predicated region
        $region53: #{tpu_custom_call.1} parent=51 // pred_check
          %p2015 = pneg %p215
        $region54: #{tpu_custom_call.1} parent=51 // pred_check_branch
          %2017 = sbr.rel (%p2015) target = $region56
        $region55: #{tpu_custom_call.1} parent=51 // pred_region
          %s2018 = sand.u32 %s200, 1
          %s2019 = scalar_lea.sflag [#allocation3], %s2018
          %s2020 = sand.u32 %s200, 1
          %s2021 = smul.addr %s2020, 256
          %s2022 = scalar_lea.vmem [#allocation2], %s2021
          %2023 = dma.done %s2019, 4096
        $region56: #{tpu_custom_call.1} parent=51 // pred_fallthru
          _
      $region52: #{tpu_custom_call.1} parent=5 // pred_fallthru
        _
    $region6: #{tpu_custom_call.1} parent=1 // loop_footer
      %s19 = sadd.s32 1, %s15
    $region7: #{tpu_custom_call.1} parent=1 // loop_footer_branch
      %14 = sbr.rel target = $region3
    $region8: #{tpu_custom_call.1} parent=1 // loop_exit
      _
    %2024 = vsyncpa [#allocation3], 1
    %s2025 = scalar_lea.sflag [#allocation3], 1
    %2026 = vsyncpa %s2025, 1

</llo_original>
